<compile_context>
chip_gen: v5e
topology: v5e:2x2
jax: 0.10.0
libtpu: 0.0.40
codegen_flags: <defaults>
</compile_context>

<pallas_src>
import functools
import math

import jax
import jax.numpy as jnp
import numpy as np
from jax import lax
from jax.experimental import pallas as pl
from jax.experimental.pallas import tpu as pltpu


def _round_up(v, m):
    return ((v + m - 1) // m) * m


# ----------------------------------------------------------------------------
# Pallas kernel: one grid step == one sample
# ----------------------------------------------------------------------------
def _deconv_kernel(x_ref, w_ref, b_ref, m_ref, o_ref, *, k, Wp, Pgrid, inv_n,
                   negative_slope, eps, instance_norm, acti):
    # x_ref: (1, Cin, Lpad)   bf16  flat row-major dilated+padded input of this sample
    # w_ref: (k*k, Cout, Cin) bf16  per-tap weights (spatially flipped, channel-swapped)
    # b_ref: (Cout, 1)        f32
    # m_ref: (1, Pgrid)       f32   1.0 on valid pseudo-spatial lanes, 0.0 on junk lanes
    # o_ref: (1, Cout, Pgrid) f32
    acc = None
    for kk in range(k * k):                              # static, unrolled (k*k small)
        kh, kw = kk // k, kk % k
        off = kh * Wp + kw                               # static shifted-slice offset
        patch = x_ref[0, :, pl.ds(off, Pgrid)]           # (Cin, Pgrid) bf16
        part = jnp.dot(w_ref[kk], patch,                 # (Cout, Cin) x (Cin, Pgrid)
                       preferred_element_type=jnp.float32)
        acc = part if acc is None else acc + part        # f32 accumulation
    y = acc + b_ref[...]                                 # (Cout, Pgrid) + (Cout, 1)

    if instance_norm:
        # PyTorch InstanceNorm2d semantics: affine=False, biased variance, eps inside rsqrt.
        # Stats over valid lanes only (row-wrap / lane-pad junk excluded by the mask).
        m = m_ref[...]                                   # (1, Pgrid), broadcasts over Cout
        mean = jnp.sum(y * m, axis=1, keepdims=True) * inv_n
        cent = (y - mean) * m
        var = jnp.sum(cent * cent, axis=1, keepdims=True) * inv_n
        y = (y - mean) * lax.rsqrt(var + eps)
    if acti:
        y = jnp.where(y >= 0, y, negative_slope * y)     # LeakyReLU
    o_ref[0] = y                                         # dense (Cout, Pgrid) store


# ----------------------------------------------------------------------------
# Wrapper mirroring DeconvLayer.forward (default ref_pad=False path)
# ----------------------------------------------------------------------------
def deconv_layer(x, weight, bias, *, kernel_size, stride, padding,
                 negative_slope=0.2, instance_norm=True, acti=True, eps=1e-5):
    """x: (N, Cin, H, W) f32; weight: (Cin, Cout, k, k) (torch layout); bias: (Cout,)."""
    N, Cin, H, W = x.shape
    Cout = weight.shape[1]
    k, s, p = kernel_size, stride, padding
    pp = k - 1 - p
    assert pp >= 0, "kernel expects padding <= kernel_size - 1"
    Hout = (H - 1) * s - 2 * p + k
    Wout = (W - 1) * s - 2 * p + k

    # --- glue (pure JAX, bf16): zero-insert (stride) + pad + flatten row-major per sample ---
    Hd, Wd = (H - 1) * s + 1, (W - 1) * s + 1
    Hp, Wp = Hd + 2 * pp, Wd + 2 * pp                    # Hp = Hout + k - 1, Wp = Wout + k - 1
    P_pseudo = Hout * Wp                                 # pseudo output grid (Hout, Wp)
    Pgrid = _round_up(max(P_pseudo, 128), 128)           # lane-dense output width
    Lpad = _round_up(max((k - 1) * (Wp + 1) + Pgrid, Hp * Wp), 128)

    xb = x.astype(jnp.bfloat16)
    x_dil = jnp.zeros((N, Cin, Hd, Wd), jnp.bfloat16).at[:, :, ::s, ::s].set(xb)
    x_pad = jnp.pad(x_dil, ((0, 0), (0, 0), (pp, pp), (pp, pp)))
    x_flat = jnp.pad(x_pad.reshape(N, Cin, Hp * Wp),
                     ((0, 0), (0, 0), (0, Lpad - Hp * Wp)))

    # ConvTranspose as regular correlation over the dilated input: flip spatially, swap
    # channels, lay taps out as (kh*k+kw, Cout, Cin).
    w_taps = (jnp.flip(weight, axis=(2, 3)).transpose(2, 3, 1, 0)
              .reshape(k * k, Cout, Cin).astype(jnp.bfloat16))
    b_col = bias.reshape(Cout, 1).astype(jnp.float32)

    # Valid-lane mask for the (Hout, Wp) pseudo grid: columns >= Wout are row-wrap junk,
    # lanes >= P_pseudo are padding. Exactly Hout*Wout valid lanes.
    q = np.arange(Pgrid)
    mask = ((q < P_pseudo) & ((q % Wp) < Wout)).astype(np.float32).reshape(1, Pgrid)
    mask = jnp.asarray(mask)

    kernel = functools.partial(
        _deconv_kernel, k=k, Wp=Wp, Pgrid=Pgrid, inv_n=1.0 / float(Hout * Wout),
        negative_slope=negative_slope, eps=eps,
        instance_norm=instance_norm, acti=acti)

    # Advisory cost estimate for XLA scheduling around the call.
    flops = 2 * N * Cout * Cin * k * k * Hout * Wout
    bytes_accessed = int(N * Cin * Lpad * 2 + k * k * Cout * Cin * 2 + Cout * 4
                         + Pgrid * 4 + N * Cout * Pgrid * 4)
    cost = pl.CostEstimate(flops=flops, transcendentals=0, bytes_accessed=bytes_accessed)

    # VMEM budget: double-buffered input + output blocks + resident weight/bias/mask + temps.
    vmem_need = (2 * Cin * Lpad * 2 + 2 * Cout * Pgrid * 4 + k * k * Cout * Cin * 2
                 + Cout * 4 + Pgrid * 4 + 4 * Cout * Pgrid * 4)
    cp_kwargs = dict(dimension_semantics=("parallel",))
    if vmem_need > 12 * 1024 * 1024:          # raise scoped limit only when actually needed
        cp_kwargs["vmem_limit_bytes"] = int(min(2 * vmem_need, 48 * 1024 * 1024))

    out = pl.pallas_call(
        kernel,
        out_shape=jax.ShapeDtypeStruct((N, Cout, Pgrid), jnp.float32),
        grid_spec=pltpu.PrefetchScalarGridSpec(
            num_scalar_prefetch=0,
            grid=(N,),
            in_specs=[
                pl.BlockSpec((1, Cin, Lpad), lambda n: (n, 0, 0)),        # per-sample input
                pl.BlockSpec((k * k, Cout, Cin), lambda n: (0, 0, 0)),    # resident weights
                pl.BlockSpec((Cout, 1), lambda n: (0, 0)),                # resident bias
                pl.BlockSpec((1, Pgrid), lambda n: (0, 0)),               # resident mask
            ],
            out_specs=pl.BlockSpec((1, Cout, Pgrid), lambda n: (n, 0, 0)),
        ),
        compiler_params=pltpu.CompilerParams(**cp_kwargs),
        cost_estimate=cost,
    )(x_flat, w_taps, b_col, mask)

    # (N, Cout, Pgrid) -> drop lane padding -> (N, Cout, Hout, Wp) -> drop row-wrap cols.
    return out[:, :, :P_pseudo].reshape(N, Cout, Hout, Wp)[:, :, :, :Wout]


# ----------------------------------------------------------------------------
# Pure-JAX reference (same bf16 operand quantization, f32 accumulation)
# ----------------------------------------------------------------------------
def _reference(x, weight, bias, *, kernel_size, stride, padding,
               negative_slope=0.2, instance_norm=True, acti=True, eps=1e-5):
    k, s, p = kernel_size, stride, padding
    w_conv = jnp.flip(weight, axis=(2, 3)).transpose(1, 0, 2, 3)   # (Cout, Cin, k, k)
    pp = k - 1 - p
    y = lax.conv_general_dilated(
        x.astype(jnp.bfloat16), w_conv.astype(jnp.bfloat16),
        window_strides=(1, 1), padding=[(pp, pp), (pp, pp)],
        lhs_dilation=(s, s), rhs_dilation=(1, 1),
        dimension_numbers=("NCHW", "OIHW", "NCHW"),
        preferred_element_type=jnp.float32)
    y = y + bias[None, :, None, None]
    if instance_norm:
        mean = y.mean(axis=(2, 3), keepdims=True)
        var = ((y - mean) ** 2).mean(axis=(2, 3), keepdims=True)
        y = (y - mean) / jnp.sqrt(var + eps)
    if acti:
        y = jnp.where(y >= 0, y, negative_slope * y)
    return y


if __name__ == "__main__":
    # DeconvLayer(in_channels=4, out_channels=8, kernel_size=3, stride=2, padding=1)
    N, Cin, Cout, H, W = 2, 4, 8, 16, 16
    k, s, p = 3, 2, 1

    key = jax.random.PRNGKey(0)
    kx, kw = jax.random.split(key)
    x = jax.random.normal(kx, (N, Cin, H, W), dtype=jnp.float32)

    # kaiming_uniform_ on ConvTranspose2d weight (Cin, Cout, k, k): fan_in = Cout*k*k
    fan_in = Cout * k * k
    bound = math.sqrt(6.0 / fan_in)
    weight = jax.random.uniform(kw, (Cin, Cout, k, k), dtype=jnp.float32,
                                minval=-bound, maxval=bound)
    bias = jnp.zeros((Cout,), dtype=jnp.float32)       # nn.init.constant_(bias, 0)

    out = deconv_layer(x, weight, bias, kernel_size=k, stride=s, padding=p)
    out = jax.block_until_ready(out)

    Hout = (H - 1) * s - 2 * p + k
    Wout = (W - 1) * s - 2 * p + k
    assert out.shape == (N, Cout, Hout, Wout)

    # Reference uses the same bf16 operand quantization with f32 accumulation, so the
    # comparison isolates kernel/indexing/norm logic rather than bf16 rounding.
    ref = _reference(x, weight, bias, kernel_size=k, stride=s, padding=p)
    np.testing.assert_allclose(np.asarray(out), np.asarray(ref), rtol=2e-3, atol=2e-3)

    print("KERNEL_OK")
</pallas_src>

<mosaic_0001>
module attributes {stable_mosaic.version = 11 : i64} {
  func.func @_deconv_kernel(%arg0: i32, %arg1: memref<1x4x1152xbf16, #tpu.memory_space<vmem>>, %arg2: memref<9x8x4xbf16, #tpu.memory_space<vmem>>, %arg3: memref<8x1xf32, #tpu.memory_space<vmem>>, %arg4: memref<1x1024xf32, #tpu.memory_space<vmem>>, %arg5: memref<1x8x1024xf32, #tpu.memory_space<vmem>>) attributes {dimension_semantics = [#tpu.dimension_semantics<parallel>], iteration_bounds = array<i64: 2>, scalar_prefetch = 0 : i64, scratch_operands = 0 : i64, tpu.core_type = #tpu.core_type<tc>, window_params = [{transform_indices = @transform_0, window_bounds = array<i64: 1, 4, 1152>}, {pipeline_mode = #tpu.pipeline_mode<synchronous>, transform_indices = @transform_1, window_bounds = array<i64: 9, 8, 4>}, {pipeline_mode = #tpu.pipeline_mode<synchronous>, transform_indices = @transform_2, window_bounds = array<i64: 8, 1>}, {pipeline_mode = #tpu.pipeline_mode<synchronous>, transform_indices = @transform_3, window_bounds = array<i64: 1, 1024>}, {transform_indices = @transform_4, window_bounds = array<i64: 1, 8, 1024>}]} {
    %c0 = arith.constant 0 : index
    %c0_0 = arith.constant 0 : index
    %c0_1 = arith.constant 0 : index
    %0 = vector.load %arg1[%c0, %c0_0, %c0_1] : memref<1x4x1152xbf16, #tpu.memory_space<vmem>>, vector<1x4x1024xbf16>
    %1 = vector.shape_cast %0 : vector<1x4x1024xbf16> to vector<4x1024xbf16>
    %c0_2 = arith.constant 0 : index
    %c0_3 = arith.constant 0 : index
    %c0_4 = arith.constant 0 : index
    %2 = vector.load %arg2[%c0_2, %c0_3, %c0_4] : memref<9x8x4xbf16, #tpu.memory_space<vmem>>, vector<1x8x4xbf16>
    %3 = vector.shape_cast %2 : vector<1x8x4xbf16> to vector<8x4xbf16>
    %cst = arith.constant dense<0.000000e+00> : vector<8x1024xf32>
    %4 = tpu.matmul %3, %1, %cst {dimension_numbers = #tpu.dot_dimension_numbers<[1], [0], [0], [1], [0, 0, 1, 1], [], []>} : vector<8x4xbf16>, vector<4x1024xbf16>, vector<8x1024xf32> -> vector<8x1024xf32>
    %c0_5 = arith.constant 0 : index
    %c0_6 = arith.constant 0 : index
    %c1 = arith.constant 1 : index
    %5 = vector.load %arg1[%c0_5, %c0_6, %c1] : memref<1x4x1152xbf16, #tpu.memory_space<vmem>>, vector<1x4x1024xbf16>
    %6 = vector.shape_cast %5 : vector<1x4x1024xbf16> to vector<4x1024xbf16>
    %c1_7 = arith.constant 1 : index
    %c0_8 = arith.constant 0 : index
    %c0_9 = arith.constant 0 : index
    %7 = vector.load %arg2[%c1_7, %c0_8, %c0_9] : memref<9x8x4xbf16, #tpu.memory_space<vmem>>, vector<1x8x4xbf16>
    %8 = vector.shape_cast %7 : vector<1x8x4xbf16> to vector<8x4xbf16>
    %cst_10 = arith.constant dense<0.000000e+00> : vector<8x1024xf32>
    %9 = tpu.matmul %8, %6, %cst_10 {dimension_numbers = #tpu.dot_dimension_numbers<[1], [0], [0], [1], [0, 0, 1, 1], [], []>} : vector<8x4xbf16>, vector<4x1024xbf16>, vector<8x1024xf32> -> vector<8x1024xf32>
    %10 = arith.addf %4, %9 : vector<8x1024xf32>
    %c0_11 = arith.constant 0 : index
    %c0_12 = arith.constant 0 : index
    %c2 = arith.constant 2 : index
    %11 = vector.load %arg1[%c0_11, %c0_12, %c2] : memref<1x4x1152xbf16, #tpu.memory_space<vmem>>, vector<1x4x1024xbf16>
    %12 = vector.shape_cast %11 : vector<1x4x1024xbf16> to vector<4x1024xbf16>
    %c2_13 = arith.constant 2 : index
    %c0_14 = arith.constant 0 : index
    %c0_15 = arith.constant 0 : index
    %13 = vector.load %arg2[%c2_13, %c0_14, %c0_15] : memref<9x8x4xbf16, #tpu.memory_space<vmem>>, vector<1x8x4xbf16>
    %14 = vector.shape_cast %13 : vector<1x8x4xbf16> to vector<8x4xbf16>
    %cst_16 = arith.constant dense<0.000000e+00> : vector<8x1024xf32>
    %15 = tpu.matmul %14, %12, %cst_16 {dimension_numbers = #tpu.dot_dimension_numbers<[1], [0], [0], [1], [0, 0, 1, 1], [], []>} : vector<8x4xbf16>, vector<4x1024xbf16>, vector<8x1024xf32> -> vector<8x1024xf32>
    %16 = arith.addf %10, %15 : vector<8x1024xf32>
    %c0_17 = arith.constant 0 : index
    %c0_18 = arith.constant 0 : index
    %c33 = arith.constant 33 : index
    %17 = vector.load %arg1[%c0_17, %c0_18, %c33] : memref<1x4x1152xbf16, #tpu.memory_space<vmem>>, vector<1x4x1024xbf16>
    %18 = vector.shape_cast %17 : vector<1x4x1024xbf16> to vector<4x1024xbf16>
    %c3 = arith.constant 3 : index
    %c0_19 = arith.constant 0 : index
    %c0_20 = arith.constant 0 : index
    %19 = vector.load %arg2[%c3, %c0_19, %c0_20] : memref<9x8x4xbf16, #tpu.memory_space<vmem>>, vector<1x8x4xbf16>
    %20 = vector.shape_cast %19 : vector<1x8x4xbf16> to vector<8x4xbf16>
    %cst_21 = arith.constant dense<0.000000e+00> : vector<8x1024xf32>
    %21 = tpu.matmul %20, %18, %cst_21 {dimension_numbers = #tpu.dot_dimension_numbers<[1], [0], [0], [1], [0, 0, 1, 1], [], []>} : vector<8x4xbf16>, vector<4x1024xbf16>, vector<8x1024xf32> -> vector<8x1024xf32>
    %22 = arith.addf %16, %21 : vector<8x1024xf32>
    %c0_22 = arith.constant 0 : index
    %c0_23 = arith.constant 0 : index
    %c34 = arith.constant 34 : index
    %23 = vector.load %arg1[%c0_22, %c0_23, %c34] : memref<1x4x1152xbf16, #tpu.memory_space<vmem>>, vector<1x4x1024xbf16>
    %24 = vector.shape_cast %23 : vector<1x4x1024xbf16> to vector<4x1024xbf16>
    %c4 = arith.constant 4 : index
    %c0_24 = arith.constant 0 : index
    %c0_25 = arith.constant 0 : index
    %25 = vector.load %arg2[%c4, %c0_24, %c0_25] : memref<9x8x4xbf16, #tpu.memory_space<vmem>>, vector<1x8x4xbf16>
    %26 = vector.shape_cast %25 : vector<1x8x4xbf16> to vector<8x4xbf16>
    %cst_26 = arith.constant dense<0.000000e+00> : vector<8x1024xf32>
    %27 = tpu.matmul %26, %24, %cst_26 {dimension_numbers = #tpu.dot_dimension_numbers<[1], [0], [0], [1], [0, 0, 1, 1], [], []>} : vector<8x4xbf16>, vector<4x1024xbf16>, vector<8x1024xf32> -> vector<8x1024xf32>
    %28 = arith.addf %22, %27 : vector<8x1024xf32>
    %c0_27 = arith.constant 0 : index
    %c0_28 = arith.constant 0 : index
    %c35 = arith.constant 35 : index
    %29 = vector.load %arg1[%c0_27, %c0_28, %c35] : memref<1x4x1152xbf16, #tpu.memory_space<vmem>>, vector<1x4x1024xbf16>
    %30 = vector.shape_cast %29 : vector<1x4x1024xbf16> to vector<4x1024xbf16>
    %c5 = arith.constant 5 : index
    %c0_29 = arith.constant 0 : index
    %c0_30 = arith.constant 0 : index
    %31 = vector.load %arg2[%c5, %c0_29, %c0_30] : memref<9x8x4xbf16, #tpu.memory_space<vmem>>, vector<1x8x4xbf16>
    %32 = vector.shape_cast %31 : vector<1x8x4xbf16> to vector<8x4xbf16>
    %cst_31 = arith.constant dense<0.000000e+00> : vector<8x1024xf32>
    %33 = tpu.matmul %32, %30, %cst_31 {dimension_numbers = #tpu.dot_dimension_numbers<[1], [0], [0], [1], [0, 0, 1, 1], [], []>} : vector<8x4xbf16>, vector<4x1024xbf16>, vector<8x1024xf32> -> vector<8x1024xf32>
    %34 = arith.addf %28, %33 : vector<8x1024xf32>
    %c0_32 = arith.constant 0 : index
    %c0_33 = arith.constant 0 : index
    %c66 = arith.constant 66 : index
    %35 = vector.load %arg1[%c0_32, %c0_33, %c66] : memref<1x4x1152xbf16, #tpu.memory_space<vmem>>, vector<1x4x1024xbf16>
    %36 = vector.shape_cast %35 : vector<1x4x1024xbf16> to vector<4x1024xbf16>
    %c6 = arith.constant 6 : index
    %c0_34 = arith.constant 0 : index
    %c0_35 = arith.constant 0 : index
    %37 = vector.load %arg2[%c6, %c0_34, %c0_35] : memref<9x8x4xbf16, #tpu.memory_space<vmem>>, vector<1x8x4xbf16>
    %38 = vector.shape_cast %37 : vector<1x8x4xbf16> to vector<8x4xbf16>
    %cst_36 = arith.constant dense<0.000000e+00> : vector<8x1024xf32>
    %39 = tpu.matmul %38, %36, %cst_36 {dimension_numbers = #tpu.dot_dimension_numbers<[1], [0], [0], [1], [0, 0, 1, 1], [], []>} : vector<8x4xbf16>, vector<4x1024xbf16>, vector<8x1024xf32> -> vector<8x1024xf32>
    %40 = arith.addf %34, %39 : vector<8x1024xf32>
    %c0_37 = arith.constant 0 : index
    %c0_38 = arith.constant 0 : index
    %c67 = arith.constant 67 : index
    %41 = vector.load %arg1[%c0_37, %c0_38, %c67] : memref<1x4x1152xbf16, #tpu.memory_space<vmem>>, vector<1x4x1024xbf16>
    %42 = vector.shape_cast %41 : vector<1x4x1024xbf16> to vector<4x1024xbf16>
    %c7 = arith.constant 7 : index
    %c0_39 = arith.constant 0 : index
    %c0_40 = arith.constant 0 : index
    %43 = vector.load %arg2[%c7, %c0_39, %c0_40] : memref<9x8x4xbf16, #tpu.memory_space<vmem>>, vector<1x8x4xbf16>
    %44 = vector.shape_cast %43 : vector<1x8x4xbf16> to vector<8x4xbf16>
    %cst_41 = arith.constant dense<0.000000e+00> : vector<8x1024xf32>
    %45 = tpu.matmul %44, %42, %cst_41 {dimension_numbers = #tpu.dot_dimension_numbers<[1], [0], [0], [1], [0, 0, 1, 1], [], []>} : vector<8x4xbf16>, vector<4x1024xbf16>, vector<8x1024xf32> -> vector<8x1024xf32>
    %46 = arith.addf %40, %45 : vector<8x1024xf32>
    %c0_42 = arith.constant 0 : index
    %c0_43 = arith.constant 0 : index
    %c68 = arith.constant 68 : index
    %47 = vector.load %arg1[%c0_42, %c0_43, %c68] : memref<1x4x1152xbf16, #tpu.memory_space<vmem>>, vector<1x4x1024xbf16>
    %48 = vector.shape_cast %47 : vector<1x4x1024xbf16> to vector<4x1024xbf16>
    %c8 = arith.constant 8 : index
    %c0_44 = arith.constant 0 : index
    %c0_45 = arith.constant 0 : index
    %49 = vector.load %arg2[%c8, %c0_44, %c0_45] : memref<9x8x4xbf16, #tpu.memory_space<vmem>>, vector<1x8x4xbf16>
    %50 = vector.shape_cast %49 : vector<1x8x4xbf16> to vector<8x4xbf16>
    %cst_46 = arith.constant dense<0.000000e+00> : vector<8x1024xf32>
    %51 = tpu.matmul %50, %48, %cst_46 {dimension_numbers = #tpu.dot_dimension_numbers<[1], [0], [0], [1], [0, 0, 1, 1], [], []>} : vector<8x4xbf16>, vector<4x1024xbf16>, vector<8x1024xf32> -> vector<8x1024xf32>
    %52 = arith.addf %46, %51 : vector<8x1024xf32>
    %c0_47 = arith.constant 0 : index
    %c0_48 = arith.constant 0 : index
    %53 = vector.load %arg3[%c0_47, %c0_48] : memref<8x1xf32, #tpu.memory_space<vmem>>, vector<8x1xf32>
    %54 = vector.broadcast %53 : vector<8x1xf32> to vector<8x1024xf32>
    %55 = arith.addf %52, %54 : vector<8x1024xf32>
    %c0_49 = arith.constant 0 : index
    %c0_50 = arith.constant 0 : index
    %56 = vector.load %arg4[%c0_49, %c0_50] : memref<1x1024xf32, #tpu.memory_space<vmem>>, vector<1x1024xf32>
    %57 = vector.broadcast %56 : vector<1x1024xf32> to vector<8x1024xf32>
    %58 = arith.mulf %55, %57 : vector<8x1024xf32>
    %cst_51 = arith.constant dense<0.000000e+00> : vector<8xf32>
    %59 = vector.multi_reduction <add>, %58, %cst_51 [1] : vector<8x1024xf32> to vector<8xf32>
    %60 = vector.shape_cast %59 : vector<8xf32> to vector<8x1xf32>
    %cst_52 = arith.constant 0.00104058278 : f32
    %61 = vector.broadcast %cst_52 : f32 to vector<8x1xf32>
    %62 = arith.mulf %60, %61 : vector<8x1xf32>
    %63 = vector.broadcast %62 : vector<8x1xf32> to vector<8x1024xf32>
    %64 = arith.subf %55, %63 : vector<8x1024xf32>
    %65 = vector.broadcast %56 : vector<1x1024xf32> to vector<8x1024xf32>
    %66 = arith.mulf %64, %65 : vector<8x1024xf32>
    %67 = arith.mulf %66, %66 : vector<8x1024xf32>
    %cst_53 = arith.constant dense<0.000000e+00> : vector<8xf32>
    %68 = vector.multi_reduction <add>, %67, %cst_53 [1] : vector<8x1024xf32> to vector<8xf32>
    %69 = vector.shape_cast %68 : vector<8xf32> to vector<8x1xf32>
    %cst_54 = arith.constant 0.00104058278 : f32
    %70 = vector.broadcast %cst_54 : f32 to vector<8x1xf32>
    %71 = arith.mulf %69, %70 : vector<8x1xf32>
    %72 = vector.broadcast %62 : vector<8x1xf32> to vector<8x1024xf32>
    %73 = arith.subf %55, %72 : vector<8x1024xf32>
    %cst_55 = arith.constant 9.99999974E-6 : f32
    %74 = vector.broadcast %cst_55 : f32 to vector<8x1xf32>
    %75 = arith.addf %71, %74 : vector<8x1xf32>
    %76 = math.rsqrt %75 : vector<8x1xf32>
    %77 = vector.broadcast %76 : vector<8x1xf32> to vector<8x1024xf32>
    %78 = arith.mulf %73, %77 : vector<8x1024xf32>
    %cst_56 = arith.constant 0.000000e+00 : f32
    %79 = vector.broadcast %cst_56 : f32 to vector<8x1024xf32>
    %80 = arith.cmpf oge, %78, %79 : vector<8x1024xf32>
    %cst_57 = arith.constant 2.000000e-01 : f32
    %81 = vector.broadcast %cst_57 : f32 to vector<8x1024xf32>
    %82 = arith.mulf %81, %78 : vector<8x1024xf32>
    %83 = arith.select %80, %78, %82 : vector<8x1024xi1>, vector<8x1024xf32>
    %c0_58 = arith.constant 0 : index
    %c0_59 = arith.constant 0 : index
    %c0_60 = arith.constant 0 : index
    %84 = vector.load %arg5[%c0_58, %c0_59, %c0_60] : memref<1x8x1024xf32, #tpu.memory_space<vmem>>, vector<1x8x1024xf32>
    %85 = vector.shape_cast %84 : vector<1x8x1024xf32> to vector<8x1024xf32>
    %86 = vector.shape_cast %83 : vector<8x1024xf32> to vector<1x8x1024xf32>
    tpu.vector_store %arg5[%c0_58, %c0_59, %c0_60], %86 {strides = array<i32>} : memref<1x8x1024xf32, #tpu.memory_space<vmem>>, vector<1x8x1024xf32>,
    return
  }
  func.func @transform_0(%arg0: i32) -> (i32, i32, i32) {
    %c0_i32 = arith.constant 0 : i32
    %c0_i32_0 = arith.constant 0 : i32
    %c0_i32_1 = arith.constant 0 : i32
    return %arg0, %c0_i32, %c0_i32_0 : i32, i32, i32
  }
  func.func @transform_1(%arg0: i32) -> (i32, i32, i32) {
    %c0_i32 = arith.constant 0 : i32
    %c0_i32_0 = arith.constant 0 : i32
    %c0_i32_1 = arith.constant 0 : i32
    %c0_i32_2 = arith.constant 0 : i32
    return %c0_i32, %c0_i32_0, %c0_i32_1 : i32, i32, i32
  }
  func.func @transform_2(%arg0: i32) -> (i32, i32) {
    %c0_i32 = arith.constant 0 : i32
    %c0_i32_0 = arith.constant 0 : i32
    %c0_i32_1 = arith.constant 0 : i32
    return %c0_i32, %c0_i32_0 : i32, i32
  }
  func.func @transform_3(%arg0: i32) -> (i32, i32) {
    %c0_i32 = arith.constant 0 : i32
    %c0_i32_0 = arith.constant 0 : i32
    %c0_i32_1 = arith.constant 0 : i32
    return %c0_i32, %c0_i32_0 : i32, i32
  }
  func.func @transform_4(%arg0: i32) -> (i32, i32, i32) {
    %c0_i32 = arith.constant 0 : i32
    %c0_i32_0 = arith.constant 0 : i32
    %c0_i32_1 = arith.constant 0 : i32
    return %arg0, %c0_i32, %c0_i32_0 : i32, i32, i32
  }
}

</mosaic_0001>

<llo_original>
// kernel: tpu_custom_call.1
$region0: #{tpu_custom_call.1}
  #allocation0 [shape = 'u32[]', space=smem, size = 0x4, offset = 0x4, fixed_abs, tag = 'smem constant byte address 0x4 - core index']
  #allocation1 [shape = 'u32[72,128]{1,0:T(1,128)}', space=vmem, size = 0x9000, scoped, tag = 'internal scratch']
  %s0 = inlined_call_operand.vmem [shape: bf16[2,4,1152], index: 0, kind: input, shape index: {}]
  %s1 = inlined_call_operand.vmem [shape: bf16[9,8,4], index: 1, kind: input, shape index: {}]
  %s2 = inlined_call_operand.vmem [shape: f32[8,1], index: 2, kind: input, shape index: {}]
  %s3 = inlined_call_operand.vmem [shape: f32[1,1024], index: 3, kind: input, shape index: {}]
  %s4 = inlined_call_operand.hbm [shape: f32[2,8,1024], index: 4, kind: output, shape index: {}]
  %s5 = sld [smem:[#allocation0]]
  $region49: #{tpu_custom_call.1} parent=0
    _
  %s7 = ssub.s32 1, %s5
  %s8 = scalar_select 0, %s7, %s5
  $region1: #{tpu_custom_call.1} parent=0
    #allocation2 [shape = 'u8[65536]{0}', space=vmem, size = 0x10000, scoped, tag = 'output window, operand 0']
    #allocation3 [shape = 's32[2]{0}', space=sflag, size = 0x8, scoped, tag = 'scoped memory for tpu_custom_call.1']
    %9 = vsyncpa [#allocation3], 0
    %s10 = scalar_lea.sflag [#allocation3], 1
    %11 = vsyncpa %s10, 0
    loop: start=0, step=1, limit=4
    $region2: #{tpu_custom_call.1} parent=1 // loop_pre_header
      _
    $region3: #{tpu_custom_call.1} parent=1 // loop_header
      %s13 = sphi 0, %s17
      %p14 = scmp.ge.s32.totalorder %s13, 4
      %s23 = sphi 0, %s25
      %s26 = sphi 0, %s23
      %s27 = sphi 0, %s26
      %s43 = sphi 0, %s27
      %s47 = sphi 0, %s47
      %s49 = sphi 0, %s47
      %s50 = sphi 0, %s49
      %s64 = sphi 0, %s50
      %s68 = sphi 0, %s68
      %s70 = sphi 0, %s68
      %s71 = sphi 0, %s70
      %s85 = sphi 0, %s71
      %s89 = sphi 0, %s89
      %s91 = sphi 0, %s89
      %s92 = sphi 0, %s91
      %s106 = sphi 0, %s92
      %s112 = sphi 0, %s114
      %s115 = sphi 0, %s112
      %s116 = sphi 0, %s115
      %s132 = sphi 0, %s116
    $region4: #{tpu_custom_call.1} parent=1 // loop_header_branch
      %16 = sbr.rel (%p14) target = $region8
    $region5: #{tpu_custom_call.1} parent=1 // loop_body
      %s18 = ssub.s32 %s13, 1
      %s19 = ssub.s32 %s13, 2
      %s20 = sadd.s32 %s13, 1
      %s21 = ssub.s32 %s13, %s20
      %p22 = scmp.eq.s32.totalorder %s21, 0
      %s24 = sadd.s32 %s23, 1
      %s25 = scalar_select %p22, %s23, %s24
      %p28 = pneg %p22
      %p29 = scmp.eq.s32.totalorder %s13, 1
      %p30 = por %p28, %p29
      %p31 = scmp.ne.s32.totalorder %s23, %s26
      %p32 = scmp.eq.s32.totalorder %s13, 0
      %p33 = por %p31, %p32
      %p34 = scmp.ne.s32.totalorder %s23, %s26
      %p35 = scmp.eq.s32.totalorder %s18, 1
      %p36 = por %p34, %p35
      %p37 = scmp.ne.s32.totalorder %s26, %s27
      %p38 = scmp.eq.s32.totalorder %s18, 0
      %p39 = por %p37, %p38
      %p40 = scmp.ne.s32.totalorder %s26, %s27
      %p41 = scmp.eq.s32.totalorder %s19, 1
      %p42 = por %p40, %p41
      %p44 = scmp.ne.s32.totalorder %s27, %s43
      %p45 = scmp.eq.s32.totalorder %s19, 0
      %p46 = por %p44, %p45
      %s48 = sadd.s32 %s47, 1
      %p51 = scmp.eq.s32.totalorder %s13, 1
      %p52 = scmp.ne.s32.totalorder %s47, %s49
      %p53 = scmp.eq.s32.totalorder %s13, 0
      %p54 = por %p52, %p53
      %p55 = scmp.ne.s32.totalorder %s47, %s49
      %p56 = scmp.eq.s32.totalorder %s18, 1
      %p57 = por %p55, %p56
      %p58 = scmp.ne.s32.totalorder %s49, %s50
      %p59 = scmp.eq.s32.totalorder %s18, 0
      %p60 = por %p58, %p59
      %p61 = scmp.ne.s32.totalorder %s49, %s50
      %p62 = scmp.eq.s32.totalorder %s19, 1
      %p63 = por %p61, %p62
      %p65 = scmp.ne.s32.totalorder %s50, %s64
      %p66 = scmp.eq.s32.totalorder %s19, 0
      %p67 = por %p65, %p66
      %s69 = sadd.s32 %s68, 1
      %p72 = scmp.eq.s32.totalorder %s13, 1
      %p73 = scmp.ne.s32.totalorder %s68, %s70
      %p74 = scmp.eq.s32.totalorder %s13, 0
      %p75 = por %p73, %p74
      %p76 = scmp.ne.s32.totalorder %s68, %s70
      %p77 = scmp.eq.s32.totalorder %s18, 1
      %p78 = por %p76, %p77
      %p79 = scmp.ne.s32.totalorder %s70, %s71
      %p80 = scmp.eq.s32.totalorder %s18, 0
      %p81 = por %p79, %p80
      %p82 = scmp.ne.s32.totalorder %s70, %s71
      %p83 = scmp.eq.s32.totalorder %s19, 1
      %p84 = por %p82, %p83
      %p86 = scmp.ne.s32.totalorder %s71, %s85
      %p87 = scmp.eq.s32.totalorder %s19, 0
      %p88 = por %p86, %p87
      %s90 = sadd.s32 %s89, 1
      %p93 = scmp.eq.s32.totalorder %s13, 1
      %p94 = scmp.ne.s32.totalorder %s89, %s91
      %p95 = scmp.eq.s32.totalorder %s13, 0
      %p96 = por %p94, %p95
      %p97 = scmp.ne.s32.totalorder %s89, %s91
      %p98 = scmp.eq.s32.totalorder %s18, 1
      %p99 = por %p97, %p98
      %p100 = scmp.ne.s32.totalorder %s91, %s92
      %p101 = scmp.eq.s32.totalorder %s18, 0
      %p102 = por %p100, %p101
      %p103 = scmp.ne.s32.totalorder %s91, %s92
      %p104 = scmp.eq.s32.totalorder %s19, 1
      %p105 = por %p103, %p104
      %p107 = scmp.ne.s32.totalorder %s92, %s106
      %p108 = scmp.eq.s32.totalorder %s19, 0
      %p109 = por %p107, %p108
      %s110 = ssub.s32 %s13, %s20
      %p111 = scmp.eq.s32.totalorder %s110, 0
      %s113 = sadd.s32 %s112, 1
      %s114 = scalar_select %p111, %s112, %s113
      %p117 = pneg %p111
      %p118 = scmp.eq.s32.totalorder %s13, 1
      %p119 = por %p117, %p118
      %p120 = scmp.ne.s32.totalorder %s112, %s115
      %p121 = scmp.eq.s32.totalorder %s13, 0
      %p122 = por %p120, %p121
      %p123 = scmp.ne.s32.totalorder %s112, %s115
      %p124 = scmp.eq.s32.totalorder %s18, 1
      %p125 = por %p123, %p124
      %p126 = scmp.ne.s32.totalorder %s115, %s116
      %p127 = scmp.eq.s32.totalorder %s18, 0
      %p128 = por %p126, %p127
      %p129 = scmp.ne.s32.totalorder %s115, %s116
      %p130 = scmp.eq.s32.totalorder %s19, 1
      %p131 = por %p129, %p130
      %p133 = scmp.ne.s32.totalorder %s116, %s132
      %p134 = scmp.eq.s32.totalorder %s19, 0
      %p135 = por %p133, %p134
      %p136 = scmp.le.s32.totalorder 1, %s13
      %p137 = scmp.lt.s32.totalorder %s13, 3
      %p138 = pnand %p136, %p137
      %p139 = pneg %p138
      // Predicated region
      $region9: #{tpu_custom_call.1} parent=5 // pred_check
        _
      $region10: #{tpu_custom_call.1} parent=5 // pred_check_branch
        %141 = sbr.rel (%p138) target = $region12
      $region11: #{tpu_custom_call.1} parent=5 // pred_region
        %s142 = ssub.s32 %s13, 1
        // Predicated region
        $region13: #{tpu_custom_call.1} parent=11 // pred_check
          %p143 = pneg %p60
        $region14: #{tpu_custom_call.1} parent=11 // pred_check_branch
          %145 = sbr.rel (%p143) target = $region16
        $region15: #{tpu_custom_call.1} parent=11 // pred_region
          _
        $region16: #{tpu_custom_call.1} parent=11 // pred_fallthru
          _
        // Predicated region
        $region17: #{tpu_custom_call.1} parent=11 // pred_check
          %p146 = pneg %p81
        $region18: #{tpu_custom_call.1} parent=11 // pred_check_branch
          %148 = sbr.rel (%p146) target = $region20
        $region19: #{tpu_custom_call.1} parent=11 // pred_region
          _
        $region20: #{tpu_custom_call.1} parent=11 // pred_fallthru
          _
        // Predicated region
        $region21: #{tpu_custom_call.1} parent=11 // pred_check
          %p149 = pneg %p102
        $region22: #{tpu_custom_call.1} parent=11 // pred_check_branch
          %151 = sbr.rel (%p149) target = $region24
        $region23: #{tpu_custom_call.1} parent=11 // pred_region
          _
        $region24: #{tpu_custom_call.1} parent=11 // pred_fallthru
          _
      $region12: #{tpu_custom_call.1} parent=5 // pred_fallthru
        _
      %p152 = scmp.lt.s32.totalorder %s13, 2
      // Predicated region
      $region25: #{tpu_custom_call.1} parent=5 // pred_check
        %p153 = pneg %p152
      $region26: #{tpu_custom_call.1} parent=5 // pred_check_branch
        %155 = sbr.rel (%p153) target = $region28
      $region27: #{tpu_custom_call.1} parent=5 // pred_region
        // Predicated region
        $region29: #{tpu_custom_call.1} parent=27 // pred_check
          %p156 = pneg %p33
        $region30: #{tpu_custom_call.1} parent=27 // pred_check_branch
          %158 = sbr.rel (%p156) target = $region32
        $region31: #{tpu_custom_call.1} parent=27 // pred_region
          %p159 = scmp.lt.s32.totalorder %s13, 1
          %s160 = scalar_select %p159, %s13, 1
          %s161 = smul.addr %s160, 9
          %s162 = smul.addr %s161, 2
          %s163 = scalar_lea.vmem %s0, %s162
        $region32: #{tpu_custom_call.1} parent=27 // pred_fallthru
          _
      $region28: #{tpu_custom_call.1} parent=5 // pred_fallthru
        _
      %p164 = scmp.le.s32.totalorder 1, %s13
      %p165 = scmp.lt.s32.totalorder %s13, 3
      %p166 = pnand %p164, %p165
      %p167 = pneg %p166
      // Predicated region
      $region33: #{tpu_custom_call.1} parent=5 // pred_check
        _
      $region34: #{tpu_custom_call.1} parent=5 // pred_check_branch
        %169 = sbr.rel (%p166) target = $region36
      $region35: #{tpu_custom_call.1} parent=5 // pred_region
        %s170 = ssub.s32 %s13, 1
        %p171 = scmp.lt.s32.totalorder %s18, 1
        %s172 = scalar_select %p171, %s18, 1
        %s173 = smul.addr %s172, 9
        %s174 = smul.addr %s173, 2
        %s175 = scalar_lea.vmem %s0, %s174
        %p176 = pneg %p39
        %p177 = pneg %p36
        %p178 = pneg %p60
        %p179 = pneg %p57
        %p180 = pneg %p81
        %p181 = pneg %p78
        %p182 = pneg %p102
        %p183 = pneg %p99
        %p184 = pneg %p128
        %p185 = pneg %p125
        %s186 = sand.u32 %s115, 1
        %s187 = scalar_lea.sflag [#allocation3], %s186
        %s188 = sand.u32 %s115, 1
        %s189 = smul.addr %s188, 64
        %s190 = scalar_lea.vmem [#allocation2], %s189
        %p191 = scmp.lt.s32.totalorder %s18, 1
        %s192 = scalar_select %p191, %s18, 1
        %s193 = smul.addr %s192, 9
        %s194 = smul.addr %s193, 2
        %s195 = scalar_lea.vmem %s0, %s194
        %v197 = vld [vmem:[%s195] sm:$0xff]
        %v198 = vld [vmem:[%s195 + $0x8] sm:$0xff]
        %v199 = vld [vmem:[%s1] sm:$0xf]
        %v200 = vld [vmem:[%s195] sm:$0xff]
        %v201 = vld [vmem:[%s195 + $0x8] sm:$0xff]
        %v202 = vld [vmem:[%s195 + $0x10] sm:$0x3]
        %s203 = scalar_lea.vmem %s1, 4
        %v204 = vld [vmem:[%s203] sm:$0xf]
        %206 = vst [vmem:[#allocation1] ss:$4 sm:$0xff] %v200
        %s208 = scalar_lea.vmem [#allocation1], 32
        %209 = vst [vmem:[%s208] ss:$4 sm:$0xff] %v201
        %v210 = vld.sshfl [vmem:[#allocation1] sm:$0xff pattern:$0x73625140]
        %v212 = vld.sshfl [vmem:[#allocation1 + $0x8] sm:$0xff pattern:$0x73625140]
        %v214 = vld.sshfl [vmem:[#allocation1 + $0x10] sm:$0xff pattern:$0x73625140]
        %v216 = vld.sshfl [vmem:[#allocation1 + $0x18] sm:$0xff pattern:$0x73625140]
        %v218 = vld.sshfl [vmem:[#allocation1 + $0x20] sm:$0xff pattern:$0x73625140]
        %v220 = vld.sshfl [vmem:[#allocation1 + $0x28] sm:$0xff pattern:$0x73625140]
        %v222 = vld.sshfl [vmem:[#allocation1 + $0x30] sm:$0xff pattern:$0x73625140]
        %v224 = vld.sshfl [vmem:[#allocation1 + $0x38] sm:$0xff pattern:$0x73625140]
        %227 = vst [vmem:[#allocation1] ss:$4 sm:$0xff] %v202
        %v228 = vld.sshfl [vmem:[#allocation1] sm:$0xff pattern:$0x73625140]
        %230 = vrot.lane.b32.xlu0 %v210, 127
        %v231 = vpop.permute.xlu0 %230
        %232 = vrot.lane.b32.xlu0 %v212, 127
        %v233 = vpop.permute.xlu0 %232
        %234 = vrot.lane.b32.xlu0 %v214, 127
        %v235 = vpop.permute.xlu0 %234
        %236 = vrot.lane.b32.xlu0 %v216, 127
        %v237 = vpop.permute.xlu0 %236
        %238 = vrot.lane.b32.xlu0 %v218, 127
        %v239 = vpop.permute.xlu0 %238
        %240 = vrot.lane.b32.xlu0 %v220, 127
        %v241 = vpop.permute.xlu0 %240
        %242 = vrot.lane.b32.xlu0 %v222, 127
        %v243 = vpop.permute.xlu0 %242
        %244 = vrot.lane.b32.xlu0 %v224, 127
        %v245 = vpop.permute.xlu0 %244
        %246 = vrot.lane.b32.xlu0 %v228, 127
        %v247 = vpop.permute.xlu0 %246
        %vm248 = vcmask 1039360
        %v249 = vsel %vm248, %v231, %v233
        %v250 = vsel %vm248, %v233, %v235
        %v251 = vsel %vm248, %v235, %v237
        %v252 = vsel %vm248, %v237, %v239
        %v253 = vsel %vm248, %v239, %v241
        %v254 = vsel %vm248, %v241, %v243
        %v255 = vsel %vm248, %v243, %v245
        %v256 = vsel %vm248, %v245, %v247
        %vm257 = vcmask 31744
        %v259 = vsel %vm257, %v204, 0
        %vm261 = vcmask 1041408
        %v263 = vsel %vm261, %v249, 0
        %v266 = vsel %vm261, %v250, 0
        %v269 = vsel %vm261, %v251, 0
        %v272 = vsel %vm261, %v252, 0
        %v275 = vsel %vm261, %v253, 0
        %v278 = vsel %vm261, %v254, 0
        %v281 = vsel %vm261, %v255, 0
        %v284 = vsel %vm261, %v256, 0
        %286 = vmatpush.bf16.msra.mxu0 0
        %287 = vmatpush.bf16.msra.mxu0 0
        %288 = vmatpush.bf16.msra.mxu0 0
        %289 = vmatpush.bf16.msra.mxu0 0
        %290 = vmatpush.bf16.msra.mxu0 0
        %291 = vmatpush.bf16.msra.mxu0 0
        %292 = vmatpush.bf16.msra.mxu0 0
        %293 = vmatpush.bf16.msra.mxu0 %v263
        %294 = vmatmul.bf16.gmra.mxu0 %v259
        %v295 = vpop.f32.mrf.mxu0
        %v296 = vadd.f32 0.0, %v295
        %v297 = vpop.f32.mrf.mxu0
        %298 = vdwg.mxu0
        %299 = vmatpush.bf16.msra.mxu0 0
        %300 = vmatpush.bf16.msra.mxu0 0
        %301 = vmatpush.bf16.msra.mxu0 0
        %302 = vmatpush.bf16.msra.mxu0 0
        %303 = vmatpush.bf16.msra.mxu0 0
        %304 = vmatpush.bf16.msra.mxu0 0
        %305 = vmatpush.bf16.msra.mxu0 0
        %306 = vmatpush.bf16.msra.mxu0 %v266
        %307 = vmatmul.bf16.gmra.mxu0 %v259
        %v308 = vpop.f32.mrf.mxu0
        %v309 = vadd.f32 0.0, %v308
        %v310 = vpop.f32.mrf.mxu0
        %311 = vdwg.mxu0
        %312 = vmatpush.bf16.msra.mxu0 0
        %313 = vmatpush.bf16.msra.mxu0 0
        %314 = vmatpush.bf16.msra.mxu0 0
        %315 = vmatpush.bf16.msra.mxu0 0
        %316 = vmatpush.bf16.msra.mxu0 0
        %317 = vmatpush.bf16.msra.mxu0 0
        %318 = vmatpush.bf16.msra.mxu0 0
        %319 = vmatpush.bf16.msra.mxu0 %v269
        %320 = vmatmul.bf16.gmra.mxu0 %v259
        %v321 = vpop.f32.mrf.mxu0
        %v322 = vadd.f32 0.0, %v321
        %v323 = vpop.f32.mrf.mxu0
        %324 = vdwg.mxu0
        %325 = vmatpush.bf16.msra.mxu0 0
        %326 = vmatpush.bf16.msra.mxu0 0
        %327 = vmatpush.bf16.msra.mxu0 0
        %328 = vmatpush.bf16.msra.mxu0 0
        %329 = vmatpush.bf16.msra.mxu0 0
        %330 = vmatpush.bf16.msra.mxu0 0
        %331 = vmatpush.bf16.msra.mxu0 0
        %332 = vmatpush.bf16.msra.mxu0 %v272
        %333 = vmatmul.bf16.gmra.mxu0 %v259
        %v334 = vpop.f32.mrf.mxu0
        %v335 = vadd.f32 0.0, %v334
        %v336 = vpop.f32.mrf.mxu0
        %337 = vdwg.mxu0
        %338 = vmatpush.bf16.msra.mxu0 0
        %339 = vmatpush.bf16.msra.mxu0 0
        %340 = vmatpush.bf16.msra.mxu0 0
        %341 = vmatpush.bf16.msra.mxu0 0
        %342 = vmatpush.bf16.msra.mxu0 0
        %343 = vmatpush.bf16.msra.mxu0 0
        %344 = vmatpush.bf16.msra.mxu0 0
        %345 = vmatpush.bf16.msra.mxu0 %v275
        %346 = vmatmul.bf16.gmra.mxu0 %v259
        %v347 = vpop.f32.mrf.mxu0
        %v348 = vadd.f32 0.0, %v347
        %v349 = vpop.f32.mrf.mxu0
        %350 = vdwg.mxu0
        %351 = vmatpush.bf16.msra.mxu0 0
        %352 = vmatpush.bf16.msra.mxu0 0
        %353 = vmatpush.bf16.msra.mxu0 0
        %354 = vmatpush.bf16.msra.mxu0 0
        %355 = vmatpush.bf16.msra.mxu0 0
        %356 = vmatpush.bf16.msra.mxu0 0
        %357 = vmatpush.bf16.msra.mxu0 0
        %358 = vmatpush.bf16.msra.mxu0 %v278
        %359 = vmatmul.bf16.gmra.mxu0 %v259
        %v360 = vpop.f32.mrf.mxu0
        %v361 = vadd.f32 0.0, %v360
        %v362 = vpop.f32.mrf.mxu0
        %363 = vdwg.mxu0
        %364 = vmatpush.bf16.msra.mxu0 0
        %365 = vmatpush.bf16.msra.mxu0 0
        %366 = vmatpush.bf16.msra.mxu0 0
        %367 = vmatpush.bf16.msra.mxu0 0
        %368 = vmatpush.bf16.msra.mxu0 0
        %369 = vmatpush.bf16.msra.mxu0 0
        %370 = vmatpush.bf16.msra.mxu0 0
        %371 = vmatpush.bf16.msra.mxu0 %v281
        %372 = vmatmul.bf16.gmra.mxu0 %v259
        %v373 = vpop.f32.mrf.mxu0
        %v374 = vadd.f32 0.0, %v373
        %v375 = vpop.f32.mrf.mxu0
        %376 = vdwg.mxu0
        %377 = vmatpush.bf16.msra.mxu0 0
        %378 = vmatpush.bf16.msra.mxu0 0
        %379 = vmatpush.bf16.msra.mxu0 0
        %380 = vmatpush.bf16.msra.mxu0 0
        %381 = vmatpush.bf16.msra.mxu0 0
        %382 = vmatpush.bf16.msra.mxu0 0
        %383 = vmatpush.bf16.msra.mxu0 0
        %384 = vmatpush.bf16.msra.mxu0 %v284
        %385 = vmatmul.bf16.gmra.mxu0 %v259
        %v386 = vpop.f32.mrf.mxu0
        %v387 = vadd.f32 0.0, %v386
        %v388 = vpop.f32.mrf.mxu0
        %389 = vdwg.mxu0
        %391 = vst [vmem:[#allocation1] ss:$4 sm:$0xff] %v197
        %s393 = scalar_lea.vmem [#allocation1], 32
        %394 = vst [vmem:[%s393] ss:$4 sm:$0xff] %v198
        %v395 = vld.sshfl [vmem:[#allocation1] sm:$0xff pattern:$0x73625140]
        %v396 = vld.sshfl [vmem:[#allocation1 + $0x8] sm:$0xff pattern:$0x73625140]
        %v397 = vld.sshfl [vmem:[#allocation1 + $0x10] sm:$0xff pattern:$0x73625140]
        %v398 = vld.sshfl [vmem:[#allocation1 + $0x18] sm:$0xff pattern:$0x73625140]
        %v399 = vld.sshfl [vmem:[#allocation1 + $0x20] sm:$0xff pattern:$0x73625140]
        %v400 = vld.sshfl [vmem:[#allocation1 + $0x28] sm:$0xff pattern:$0x73625140]
        %v401 = vld.sshfl [vmem:[#allocation1 + $0x30] sm:$0xff pattern:$0x73625140]
        %v402 = vld.sshfl [vmem:[#allocation1 + $0x38] sm:$0xff pattern:$0x73625140]
        %v404 = vsel %vm257, %v199, 0
        %v406 = vsel %vm261, %v395, 0
        %v408 = vsel %vm261, %v396, 0
        %v410 = vsel %vm261, %v397, 0
        %v412 = vsel %vm261, %v398, 0
        %v414 = vsel %vm261, %v399, 0
        %v416 = vsel %vm261, %v400, 0
        %v418 = vsel %vm261, %v401, 0
        %v420 = vsel %vm261, %v402, 0
        %422 = vmatpush.bf16.msra.mxu0 0
        %423 = vmatpush.bf16.msra.mxu0 0
        %424 = vmatpush.bf16.msra.mxu0 0
        %425 = vmatpush.bf16.msra.mxu0 0
        %426 = vmatpush.bf16.msra.mxu0 0
        %427 = vmatpush.bf16.msra.mxu0 0
        %428 = vmatpush.bf16.msra.mxu0 0
        %429 = vmatpush.bf16.msra.mxu0 %v406
        %430 = vmatmul.bf16.gmra.mxu0 %v404
        %v431 = vpop.f32.mrf.mxu0
        %v432 = vadd.f32 %v296, %v431
        %v433 = vpop.f32.mrf.mxu0
        %434 = vdwg.mxu0
        %435 = vmatpush.bf16.msra.mxu0 0
        %436 = vmatpush.bf16.msra.mxu0 0
        %437 = vmatpush.bf16.msra.mxu0 0
        %438 = vmatpush.bf16.msra.mxu0 0
        %439 = vmatpush.bf16.msra.mxu0 0
        %440 = vmatpush.bf16.msra.mxu0 0
        %441 = vmatpush.bf16.msra.mxu0 0
        %442 = vmatpush.bf16.msra.mxu0 %v408
        %443 = vmatmul.bf16.gmra.mxu0 %v404
        %v444 = vpop.f32.mrf.mxu0
        %v445 = vadd.f32 %v309, %v444
        %v446 = vpop.f32.mrf.mxu0
        %447 = vdwg.mxu0
        %448 = vmatpush.bf16.msra.mxu0 0
        %449 = vmatpush.bf16.msra.mxu0 0
        %450 = vmatpush.bf16.msra.mxu0 0
        %451 = vmatpush.bf16.msra.mxu0 0
        %452 = vmatpush.bf16.msra.mxu0 0
        %453 = vmatpush.bf16.msra.mxu0 0
        %454 = vmatpush.bf16.msra.mxu0 0
        %455 = vmatpush.bf16.msra.mxu0 %v410
        %456 = vmatmul.bf16.gmra.mxu0 %v404
        %v457 = vpop.f32.mrf.mxu0
        %v458 = vadd.f32 %v322, %v457
        %v459 = vpop.f32.mrf.mxu0
        %460 = vdwg.mxu0
        %461 = vmatpush.bf16.msra.mxu0 0
        %462 = vmatpush.bf16.msra.mxu0 0
        %463 = vmatpush.bf16.msra.mxu0 0
        %464 = vmatpush.bf16.msra.mxu0 0
        %465 = vmatpush.bf16.msra.mxu0 0
        %466 = vmatpush.bf16.msra.mxu0 0
        %467 = vmatpush.bf16.msra.mxu0 0
        %468 = vmatpush.bf16.msra.mxu0 %v412
        %469 = vmatmul.bf16.gmra.mxu0 %v404
        %v470 = vpop.f32.mrf.mxu0
        %v471 = vadd.f32 %v335, %v470
        %v472 = vpop.f32.mrf.mxu0
        %473 = vdwg.mxu0
        %474 = vmatpush.bf16.msra.mxu0 0
        %475 = vmatpush.bf16.msra.mxu0 0
        %476 = vmatpush.bf16.msra.mxu0 0
        %477 = vmatpush.bf16.msra.mxu0 0
        %478 = vmatpush.bf16.msra.mxu0 0
        %479 = vmatpush.bf16.msra.mxu0 0
        %480 = vmatpush.bf16.msra.mxu0 0
        %481 = vmatpush.bf16.msra.mxu0 %v414
        %482 = vmatmul.bf16.gmra.mxu0 %v404
        %v483 = vpop.f32.mrf.mxu0
        %v484 = vadd.f32 %v348, %v483
        %v485 = vpop.f32.mrf.mxu0
        %486 = vdwg.mxu0
        %487 = vmatpush.bf16.msra.mxu0 0
        %488 = vmatpush.bf16.msra.mxu0 0
        %489 = vmatpush.bf16.msra.mxu0 0
        %490 = vmatpush.bf16.msra.mxu0 0
        %491 = vmatpush.bf16.msra.mxu0 0
        %492 = vmatpush.bf16.msra.mxu0 0
        %493 = vmatpush.bf16.msra.mxu0 0
        %494 = vmatpush.bf16.msra.mxu0 %v416
        %495 = vmatmul.bf16.gmra.mxu0 %v404
        %v496 = vpop.f32.mrf.mxu0
        %v497 = vadd.f32 %v361, %v496
        %v498 = vpop.f32.mrf.mxu0
        %499 = vdwg.mxu0
        %500 = vmatpush.bf16.msra.mxu0 0
        %501 = vmatpush.bf16.msra.mxu0 0
        %502 = vmatpush.bf16.msra.mxu0 0
        %503 = vmatpush.bf16.msra.mxu0 0
        %504 = vmatpush.bf16.msra.mxu0 0
        %505 = vmatpush.bf16.msra.mxu0 0
        %506 = vmatpush.bf16.msra.mxu0 0
        %507 = vmatpush.bf16.msra.mxu0 %v418
        %508 = vmatmul.bf16.gmra.mxu0 %v404
        %v509 = vpop.f32.mrf.mxu0
        %v510 = vadd.f32 %v374, %v509
        %v511 = vpop.f32.mrf.mxu0
        %512 = vdwg.mxu0
        %513 = vmatpush.bf16.msra.mxu0 0
        %514 = vmatpush.bf16.msra.mxu0 0
        %515 = vmatpush.bf16.msra.mxu0 0
        %516 = vmatpush.bf16.msra.mxu0 0
        %517 = vmatpush.bf16.msra.mxu0 0
        %518 = vmatpush.bf16.msra.mxu0 0
        %519 = vmatpush.bf16.msra.mxu0 0
        %520 = vmatpush.bf16.msra.mxu0 %v420
        %521 = vmatmul.bf16.gmra.mxu0 %v404
        %v522 = vpop.f32.mrf.mxu0
        %v523 = vadd.f32 %v387, %v522
        %v524 = vpop.f32.mrf.mxu0
        %525 = vdwg.mxu0
        %v526 = vld [vmem:[%s195] sm:$0xff]
        %v527 = vld [vmem:[%s195 + $0x8] sm:$0xff]
        %v528 = vld [vmem:[%s195 + $0x10] sm:$0x3]
        %s529 = scalar_lea.vmem %s1, 8
        %v530 = vld [vmem:[%s529] sm:$0xf]
        %532 = vst [vmem:[#allocation1] ss:$4 sm:$0xff] %v526
        %s534 = scalar_lea.vmem [#allocation1], 32
        %535 = vst [vmem:[%s534] ss:$4 sm:$0xff] %v527
        %v536 = vld.sshfl [vmem:[#allocation1] sm:$0xff pattern:$0x73625140]
        %v538 = vld.sshfl [vmem:[#allocation1 + $0x8] sm:$0xff pattern:$0x73625140]
        %v540 = vld.sshfl [vmem:[#allocation1 + $0x10] sm:$0xff pattern:$0x73625140]
        %v542 = vld.sshfl [vmem:[#allocation1 + $0x18] sm:$0xff pattern:$0x73625140]
        %v544 = vld.sshfl [vmem:[#allocation1 + $0x20] sm:$0xff pattern:$0x73625140]
        %v546 = vld.sshfl [vmem:[#allocation1 + $0x28] sm:$0xff pattern:$0x73625140]
        %v548 = vld.sshfl [vmem:[#allocation1 + $0x30] sm:$0xff pattern:$0x73625140]
        %v550 = vld.sshfl [vmem:[#allocation1 + $0x38] sm:$0xff pattern:$0x73625140]
        %553 = vst [vmem:[#allocation1] ss:$4 sm:$0xff] %v528
        %v554 = vld.sshfl [vmem:[#allocation1] sm:$0xff pattern:$0x73625140]
        %556 = vrot.lane.b32.xlu0 %v536, 126
        %v557 = vpop.permute.xlu0 %556
        %558 = vrot.lane.b32.xlu0 %v538, 126
        %v559 = vpop.permute.xlu0 %558
        %560 = vrot.lane.b32.xlu0 %v540, 126
        %v561 = vpop.permute.xlu0 %560
        %562 = vrot.lane.b32.xlu0 %v542, 126
        %v563 = vpop.permute.xlu0 %562
        %564 = vrot.lane.b32.xlu0 %v544, 126
        %v565 = vpop.permute.xlu0 %564
        %566 = vrot.lane.b32.xlu0 %v546, 126
        %v567 = vpop.permute.xlu0 %566
        %568 = vrot.lane.b32.xlu0 %v548, 126
        %v569 = vpop.permute.xlu0 %568
        %570 = vrot.lane.b32.xlu0 %v550, 126
        %v571 = vpop.permute.xlu0 %570
        %572 = vrot.lane.b32.xlu0 %v554, 126
        %v573 = vpop.permute.xlu0 %572
        %vm574 = vcmask 1031168
        %v575 = vsel %vm574, %v557, %v559
        %v576 = vsel %vm574, %v559, %v561
        %v577 = vsel %vm574, %v561, %v563
        %v578 = vsel %vm574, %v563, %v565
        %v579 = vsel %vm574, %v565, %v567
        %v580 = vsel %vm574, %v567, %v569
        %v581 = vsel %vm574, %v569, %v571
        %v582 = vsel %vm574, %v571, %v573
        %v584 = vsel %vm257, %v530, 0
        %v587 = vsel %vm261, %v575, 0
        %v590 = vsel %vm261, %v576, 0
        %v593 = vsel %vm261, %v577, 0
        %v596 = vsel %vm261, %v578, 0
        %v599 = vsel %vm261, %v579, 0
        %v602 = vsel %vm261, %v580, 0
        %v605 = vsel %vm261, %v581, 0
        %v608 = vsel %vm261, %v582, 0
        %610 = vmatpush.bf16.msra.mxu0 0
        %611 = vmatpush.bf16.msra.mxu0 0
        %612 = vmatpush.bf16.msra.mxu0 0
        %613 = vmatpush.bf16.msra.mxu0 0
        %614 = vmatpush.bf16.msra.mxu0 0
        %615 = vmatpush.bf16.msra.mxu0 0
        %616 = vmatpush.bf16.msra.mxu0 0
        %617 = vmatpush.bf16.msra.mxu0 %v587
        %618 = vmatmul.bf16.gmra.mxu0 %v584
        %v619 = vpop.f32.mrf.mxu0
        %v620 = vadd.f32 0.0, %v619
        %v621 = vpop.f32.mrf.mxu0
        %622 = vdwg.mxu0
        %623 = vmatpush.bf16.msra.mxu0 0
        %624 = vmatpush.bf16.msra.mxu0 0
        %625 = vmatpush.bf16.msra.mxu0 0
        %626 = vmatpush.bf16.msra.mxu0 0
        %627 = vmatpush.bf16.msra.mxu0 0
        %628 = vmatpush.bf16.msra.mxu0 0
        %629 = vmatpush.bf16.msra.mxu0 0
        %630 = vmatpush.bf16.msra.mxu0 %v590
        %631 = vmatmul.bf16.gmra.mxu0 %v584
        %v632 = vpop.f32.mrf.mxu0
        %v633 = vadd.f32 0.0, %v632
        %v634 = vpop.f32.mrf.mxu0
        %635 = vdwg.mxu0
        %636 = vmatpush.bf16.msra.mxu0 0
        %637 = vmatpush.bf16.msra.mxu0 0
        %638 = vmatpush.bf16.msra.mxu0 0
        %639 = vmatpush.bf16.msra.mxu0 0
        %640 = vmatpush.bf16.msra.mxu0 0
        %641 = vmatpush.bf16.msra.mxu0 0
        %642 = vmatpush.bf16.msra.mxu0 0
        %643 = vmatpush.bf16.msra.mxu0 %v593
        %644 = vmatmul.bf16.gmra.mxu0 %v584
        %v645 = vpop.f32.mrf.mxu0
        %v646 = vadd.f32 0.0, %v645
        %v647 = vpop.f32.mrf.mxu0
        %648 = vdwg.mxu0
        %649 = vmatpush.bf16.msra.mxu0 0
        %650 = vmatpush.bf16.msra.mxu0 0
        %651 = vmatpush.bf16.msra.mxu0 0
        %652 = vmatpush.bf16.msra.mxu0 0
        %653 = vmatpush.bf16.msra.mxu0 0
        %654 = vmatpush.bf16.msra.mxu0 0
        %655 = vmatpush.bf16.msra.mxu0 0
        %656 = vmatpush.bf16.msra.mxu0 %v596
        %657 = vmatmul.bf16.gmra.mxu0 %v584
        %v658 = vpop.f32.mrf.mxu0
        %v659 = vadd.f32 0.0, %v658
        %v660 = vpop.f32.mrf.mxu0
        %661 = vdwg.mxu0
        %662 = vmatpush.bf16.msra.mxu0 0
        %663 = vmatpush.bf16.msra.mxu0 0
        %664 = vmatpush.bf16.msra.mxu0 0
        %665 = vmatpush.bf16.msra.mxu0 0
        %666 = vmatpush.bf16.msra.mxu0 0
        %667 = vmatpush.bf16.msra.mxu0 0
        %668 = vmatpush.bf16.msra.mxu0 0
        %669 = vmatpush.bf16.msra.mxu0 %v599
        %670 = vmatmul.bf16.gmra.mxu0 %v584
        %v671 = vpop.f32.mrf.mxu0
        %v672 = vadd.f32 0.0, %v671
        %v673 = vpop.f32.mrf.mxu0
        %674 = vdwg.mxu0
        %675 = vmatpush.bf16.msra.mxu0 0
        %676 = vmatpush.bf16.msra.mxu0 0
        %677 = vmatpush.bf16.msra.mxu0 0
        %678 = vmatpush.bf16.msra.mxu0 0
        %679 = vmatpush.bf16.msra.mxu0 0
        %680 = vmatpush.bf16.msra.mxu0 0
        %681 = vmatpush.bf16.msra.mxu0 0
        %682 = vmatpush.bf16.msra.mxu0 %v602
        %683 = vmatmul.bf16.gmra.mxu0 %v584
        %v684 = vpop.f32.mrf.mxu0
        %v685 = vadd.f32 0.0, %v684
        %v686 = vpop.f32.mrf.mxu0
        %687 = vdwg.mxu0
        %688 = vmatpush.bf16.msra.mxu0 0
        %689 = vmatpush.bf16.msra.mxu0 0
        %690 = vmatpush.bf16.msra.mxu0 0
        %691 = vmatpush.bf16.msra.mxu0 0
        %692 = vmatpush.bf16.msra.mxu0 0
        %693 = vmatpush.bf16.msra.mxu0 0
        %694 = vmatpush.bf16.msra.mxu0 0
        %695 = vmatpush.bf16.msra.mxu0 %v605
        %696 = vmatmul.bf16.gmra.mxu0 %v584
        %v697 = vpop.f32.mrf.mxu0
        %v698 = vadd.f32 0.0, %v697
        %v699 = vpop.f32.mrf.mxu0
        %700 = vdwg.mxu0
        %701 = vmatpush.bf16.msra.mxu0 0
        %702 = vmatpush.bf16.msra.mxu0 0
        %703 = vmatpush.bf16.msra.mxu0 0
        %704 = vmatpush.bf16.msra.mxu0 0
        %705 = vmatpush.bf16.msra.mxu0 0
        %706 = vmatpush.bf16.msra.mxu0 0
        %707 = vmatpush.bf16.msra.mxu0 0
        %708 = vmatpush.bf16.msra.mxu0 %v608
        %709 = vmatmul.bf16.gmra.mxu0 %v584
        %v710 = vpop.f32.mrf.mxu0
        %v711 = vadd.f32 0.0, %v710
        %v712 = vpop.f32.mrf.mxu0
        %713 = vdwg.mxu0
        %v714 = vadd.f32 %v432, %v620
        %v715 = vadd.f32 %v445, %v633
        %v716 = vadd.f32 %v458, %v646
        %v717 = vadd.f32 %v471, %v659
        %v718 = vadd.f32 %v484, %v672
        %v719 = vadd.f32 %v497, %v685
        %v720 = vadd.f32 %v510, %v698
        %v721 = vadd.f32 %v523, %v711
        %v722 = vld [vmem:[%s195] sm:$0xff]
        %v723 = vld [vmem:[%s195 + $0x8] sm:$0xff]
        %v724 = vld [vmem:[%s195 + $0x10] sm:$0x3]
        %s725 = scalar_lea.vmem %s1, 12
        %v726 = vld [vmem:[%s725] sm:$0xf]
        %728 = vst [vmem:[#allocation1] ss:$4 sm:$0xff] %v722
        %s730 = scalar_lea.vmem [#allocation1], 32
        %731 = vst [vmem:[%s730] ss:$4 sm:$0xff] %v723
        %v732 = vld.sshfl [vmem:[#allocation1] sm:$0xff pattern:$0x73625140]
        %v734 = vld.sshfl [vmem:[#allocation1 + $0x8] sm:$0xff pattern:$0x73625140]
        %v736 = vld.sshfl [vmem:[#allocation1 + $0x10] sm:$0xff pattern:$0x73625140]
        %v738 = vld.sshfl [vmem:[#allocation1 + $0x18] sm:$0xff pattern:$0x73625140]
        %v740 = vld.sshfl [vmem:[#allocation1 + $0x20] sm:$0xff pattern:$0x73625140]
        %v742 = vld.sshfl [vmem:[#allocation1 + $0x28] sm:$0xff pattern:$0x73625140]
        %v744 = vld.sshfl [vmem:[#allocation1 + $0x30] sm:$0xff pattern:$0x73625140]
        %v746 = vld.sshfl [vmem:[#allocation1 + $0x38] sm:$0xff pattern:$0x73625140]
        %749 = vst [vmem:[#allocation1] ss:$4 sm:$0xff] %v724
        %v750 = vld.sshfl [vmem:[#allocation1] sm:$0xff pattern:$0x73625140]
        %752 = vrot.lane.b32.xlu0 %v732, 95
        %v753 = vpop.permute.xlu0 %752
        %754 = vrot.lane.b32.xlu0 %v734, 95
        %v755 = vpop.permute.xlu0 %754
        %756 = vrot.lane.b32.xlu0 %v736, 95
        %v757 = vpop.permute.xlu0 %756
        %758 = vrot.lane.b32.xlu0 %v738, 95
        %v759 = vpop.permute.xlu0 %758
        %760 = vrot.lane.b32.xlu0 %v740, 95
        %v761 = vpop.permute.xlu0 %760
        %762 = vrot.lane.b32.xlu0 %v742, 95
        %v763 = vpop.permute.xlu0 %762
        %764 = vrot.lane.b32.xlu0 %v744, 95
        %v765 = vpop.permute.xlu0 %764
        %766 = vrot.lane.b32.xlu0 %v746, 95
        %v767 = vpop.permute.xlu0 %766
        %768 = vrot.lane.b32.xlu0 %v750, 95
        %v769 = vpop.permute.xlu0 %768
        %vm770 = vcmask 777216
        %v771 = vsel %vm770, %v753, %v755
        %v772 = vsel %vm770, %v755, %v757
        %v773 = vsel %vm770, %v757, %v759
        %v774 = vsel %vm770, %v759, %v761
        %v775 = vsel %vm770, %v761, %v763
        %v776 = vsel %vm770, %v763, %v765
        %v777 = vsel %vm770, %v765, %v767
        %v778 = vsel %vm770, %v767, %v769
        %v780 = vsel %vm257, %v726, 0
        %v783 = vsel %vm261, %v771, 0
        %v786 = vsel %vm261, %v772, 0
        %v789 = vsel %vm261, %v773, 0
        %v792 = vsel %vm261, %v774, 0
        %v795 = vsel %vm261, %v775, 0
        %v798 = vsel %vm261, %v776, 0
        %v801 = vsel %vm261, %v777, 0
        %v804 = vsel %vm261, %v778, 0
        %806 = vmatpush.bf16.msra.mxu0 0
        %807 = vmatpush.bf16.msra.mxu0 0
        %808 = vmatpush.bf16.msra.mxu0 0
        %809 = vmatpush.bf16.msra.mxu0 0
        %810 = vmatpush.bf16.msra.mxu0 0
        %811 = vmatpush.bf16.msra.mxu0 0
        %812 = vmatpush.bf16.msra.mxu0 0
        %813 = vmatpush.bf16.msra.mxu0 %v783
        %814 = vmatmul.bf16.gmra.mxu0 %v780
        %v815 = vpop.f32.mrf.mxu0
        %v816 = vadd.f32 0.0, %v815
        %v817 = vpop.f32.mrf.mxu0
        %818 = vdwg.mxu0
        %819 = vmatpush.bf16.msra.mxu0 0
        %820 = vmatpush.bf16.msra.mxu0 0
        %821 = vmatpush.bf16.msra.mxu0 0
        %822 = vmatpush.bf16.msra.mxu0 0
        %823 = vmatpush.bf16.msra.mxu0 0
        %824 = vmatpush.bf16.msra.mxu0 0
        %825 = vmatpush.bf16.msra.mxu0 0
        %826 = vmatpush.bf16.msra.mxu0 %v786
        %827 = vmatmul.bf16.gmra.mxu0 %v780
        %v828 = vpop.f32.mrf.mxu0
        %v829 = vadd.f32 0.0, %v828
        %v830 = vpop.f32.mrf.mxu0
        %831 = vdwg.mxu0
        %832 = vmatpush.bf16.msra.mxu0 0
        %833 = vmatpush.bf16.msra.mxu0 0
        %834 = vmatpush.bf16.msra.mxu0 0
        %835 = vmatpush.bf16.msra.mxu0 0
        %836 = vmatpush.bf16.msra.mxu0 0
        %837 = vmatpush.bf16.msra.mxu0 0
        %838 = vmatpush.bf16.msra.mxu0 0
        %839 = vmatpush.bf16.msra.mxu0 %v789
        %840 = vmatmul.bf16.gmra.mxu0 %v780
        %v841 = vpop.f32.mrf.mxu0
        %v842 = vadd.f32 0.0, %v841
        %v843 = vpop.f32.mrf.mxu0
        %844 = vdwg.mxu0
        %845 = vmatpush.bf16.msra.mxu0 0
        %846 = vmatpush.bf16.msra.mxu0 0
        %847 = vmatpush.bf16.msra.mxu0 0
        %848 = vmatpush.bf16.msra.mxu0 0
        %849 = vmatpush.bf16.msra.mxu0 0
        %850 = vmatpush.bf16.msra.mxu0 0
        %851 = vmatpush.bf16.msra.mxu0 0
        %852 = vmatpush.bf16.msra.mxu0 %v792
        %853 = vmatmul.bf16.gmra.mxu0 %v780
        %v854 = vpop.f32.mrf.mxu0
        %v855 = vadd.f32 0.0, %v854
        %v856 = vpop.f32.mrf.mxu0
        %857 = vdwg.mxu0
        %858 = vmatpush.bf16.msra.mxu0 0
        %859 = vmatpush.bf16.msra.mxu0 0
        %860 = vmatpush.bf16.msra.mxu0 0
        %861 = vmatpush.bf16.msra.mxu0 0
        %862 = vmatpush.bf16.msra.mxu0 0
        %863 = vmatpush.bf16.msra.mxu0 0
        %864 = vmatpush.bf16.msra.mxu0 0
        %865 = vmatpush.bf16.msra.mxu0 %v795
        %866 = vmatmul.bf16.gmra.mxu0 %v780
        %v867 = vpop.f32.mrf.mxu0
        %v868 = vadd.f32 0.0, %v867
        %v869 = vpop.f32.mrf.mxu0
        %870 = vdwg.mxu0
        %871 = vmatpush.bf16.msra.mxu0 0
        %872 = vmatpush.bf16.msra.mxu0 0
        %873 = vmatpush.bf16.msra.mxu0 0
        %874 = vmatpush.bf16.msra.mxu0 0
        %875 = vmatpush.bf16.msra.mxu0 0
        %876 = vmatpush.bf16.msra.mxu0 0
        %877 = vmatpush.bf16.msra.mxu0 0
        %878 = vmatpush.bf16.msra.mxu0 %v798
        %879 = vmatmul.bf16.gmra.mxu0 %v780
        %v880 = vpop.f32.mrf.mxu0
        %v881 = vadd.f32 0.0, %v880
        %v882 = vpop.f32.mrf.mxu0
        %883 = vdwg.mxu0
        %884 = vmatpush.bf16.msra.mxu0 0
        %885 = vmatpush.bf16.msra.mxu0 0
        %886 = vmatpush.bf16.msra.mxu0 0
        %887 = vmatpush.bf16.msra.mxu0 0
        %888 = vmatpush.bf16.msra.mxu0 0
        %889 = vmatpush.bf16.msra.mxu0 0
        %890 = vmatpush.bf16.msra.mxu0 0
        %891 = vmatpush.bf16.msra.mxu0 %v801
        %892 = vmatmul.bf16.gmra.mxu0 %v780
        %v893 = vpop.f32.mrf.mxu0
        %v894 = vadd.f32 0.0, %v893
        %v895 = vpop.f32.mrf.mxu0
        %896 = vdwg.mxu0
        %897 = vmatpush.bf16.msra.mxu0 0
        %898 = vmatpush.bf16.msra.mxu0 0
        %899 = vmatpush.bf16.msra.mxu0 0
        %900 = vmatpush.bf16.msra.mxu0 0
        %901 = vmatpush.bf16.msra.mxu0 0
        %902 = vmatpush.bf16.msra.mxu0 0
        %903 = vmatpush.bf16.msra.mxu0 0
        %904 = vmatpush.bf16.msra.mxu0 %v804
        %905 = vmatmul.bf16.gmra.mxu0 %v780
        %v906 = vpop.f32.mrf.mxu0
        %v907 = vadd.f32 0.0, %v906
        %v908 = vpop.f32.mrf.mxu0
        %909 = vdwg.mxu0
        %v910 = vadd.f32 %v714, %v816
        %v911 = vadd.f32 %v715, %v829
        %v912 = vadd.f32 %v716, %v842
        %v913 = vadd.f32 %v717, %v855
        %v914 = vadd.f32 %v718, %v868
        %v915 = vadd.f32 %v719, %v881
        %v916 = vadd.f32 %v720, %v894
        %v917 = vadd.f32 %v721, %v907
        %v918 = vld [vmem:[%s195] sm:$0xff]
        %v919 = vld [vmem:[%s195 + $0x8] sm:$0xff]
        %v920 = vld [vmem:[%s195 + $0x10] sm:$0x3]
        %s921 = scalar_lea.vmem %s1, 16
        %v922 = vld [vmem:[%s921] sm:$0xf]
        %924 = vst [vmem:[#allocation1] ss:$4 sm:$0xff] %v918
        %s926 = scalar_lea.vmem [#allocation1], 32
        %927 = vst [vmem:[%s926] ss:$4 sm:$0xff] %v919
        %v928 = vld.sshfl [vmem:[#allocation1] sm:$0xff pattern:$0x73625140]
        %v930 = vld.sshfl [vmem:[#allocation1 + $0x8] sm:$0xff pattern:$0x73625140]
        %v932 = vld.sshfl [vmem:[#allocation1 + $0x10] sm:$0xff pattern:$0x73625140]
        %v934 = vld.sshfl [vmem:[#allocation1 + $0x18] sm:$0xff pattern:$0x73625140]
        %v936 = vld.sshfl [vmem:[#allocation1 + $0x20] sm:$0xff pattern:$0x73625140]
        %v938 = vld.sshfl [vmem:[#allocation1 + $0x28] sm:$0xff pattern:$0x73625140]
        %v940 = vld.sshfl [vmem:[#allocation1 + $0x30] sm:$0xff pattern:$0x73625140]
        %v942 = vld.sshfl [vmem:[#allocation1 + $0x38] sm:$0xff pattern:$0x73625140]
        %945 = vst [vmem:[#allocation1] ss:$4 sm:$0xff] %v920
        %v946 = vld.sshfl [vmem:[#allocation1] sm:$0xff pattern:$0x73625140]
        %948 = vrot.lane.b32.xlu0 %v928, 94
        %v949 = vpop.permute.xlu0 %948
        %950 = vrot.lane.b32.xlu0 %v930, 94
        %v951 = vpop.permute.xlu0 %950
        %952 = vrot.lane.b32.xlu0 %v932, 94
        %v953 = vpop.permute.xlu0 %952
        %954 = vrot.lane.b32.xlu0 %v934, 94
        %v955 = vpop.permute.xlu0 %954
        %956 = vrot.lane.b32.xlu0 %v936, 94
        %v957 = vpop.permute.xlu0 %956
        %958 = vrot.lane.b32.xlu0 %v938, 94
        %v959 = vpop.permute.xlu0 %958
        %960 = vrot.lane.b32.xlu0 %v940, 94
        %v961 = vpop.permute.xlu0 %960
        %962 = vrot.lane.b32.xlu0 %v942, 94
        %v963 = vpop.permute.xlu0 %962
        %964 = vrot.lane.b32.xlu0 %v946, 94
        %v965 = vpop.permute.xlu0 %964
        %vm966 = vcmask 769024
        %v967 = vsel %vm966, %v949, %v951
        %v968 = vsel %vm966, %v951, %v953
        %v969 = vsel %vm966, %v953, %v955
        %v970 = vsel %vm966, %v955, %v957
        %v971 = vsel %vm966, %v957, %v959
        %v972 = vsel %vm966, %v959, %v961
        %v973 = vsel %vm966, %v961, %v963
        %v974 = vsel %vm966, %v963, %v965
        %v976 = vsel %vm257, %v922, 0
        %v979 = vsel %vm261, %v967, 0
        %v982 = vsel %vm261, %v968, 0
        %v985 = vsel %vm261, %v969, 0
        %v988 = vsel %vm261, %v970, 0
        %v991 = vsel %vm261, %v971, 0
        %v994 = vsel %vm261, %v972, 0
        %v997 = vsel %vm261, %v973, 0
        %v1000 = vsel %vm261, %v974, 0
        %1002 = vmatpush.bf16.msra.mxu0 0
        %1003 = vmatpush.bf16.msra.mxu0 0
        %1004 = vmatpush.bf16.msra.mxu0 0
        %1005 = vmatpush.bf16.msra.mxu0 0
        %1006 = vmatpush.bf16.msra.mxu0 0
        %1007 = vmatpush.bf16.msra.mxu0 0
        %1008 = vmatpush.bf16.msra.mxu0 0
        %1009 = vmatpush.bf16.msra.mxu0 %v979
        %1010 = vmatmul.bf16.gmra.mxu0 %v976
        %v1011 = vpop.f32.mrf.mxu0
        %v1012 = vadd.f32 0.0, %v1011
        %v1013 = vpop.f32.mrf.mxu0
        %1014 = vdwg.mxu0
        %1015 = vmatpush.bf16.msra.mxu0 0
        %1016 = vmatpush.bf16.msra.mxu0 0
        %1017 = vmatpush.bf16.msra.mxu0 0
        %1018 = vmatpush.bf16.msra.mxu0 0
        %1019 = vmatpush.bf16.msra.mxu0 0
        %1020 = vmatpush.bf16.msra.mxu0 0
        %1021 = vmatpush.bf16.msra.mxu0 0
        %1022 = vmatpush.bf16.msra.mxu0 %v982
        %1023 = vmatmul.bf16.gmra.mxu0 %v976
        %v1024 = vpop.f32.mrf.mxu0
        %v1025 = vadd.f32 0.0, %v1024
        %v1026 = vpop.f32.mrf.mxu0
        %1027 = vdwg.mxu0
        %1028 = vmatpush.bf16.msra.mxu0 0
        %1029 = vmatpush.bf16.msra.mxu0 0
        %1030 = vmatpush.bf16.msra.mxu0 0
        %1031 = vmatpush.bf16.msra.mxu0 0
        %1032 = vmatpush.bf16.msra.mxu0 0
        %1033 = vmatpush.bf16.msra.mxu0 0
        %1034 = vmatpush.bf16.msra.mxu0 0
        %1035 = vmatpush.bf16.msra.mxu0 %v985
        %1036 = vmatmul.bf16.gmra.mxu0 %v976
        %v1037 = vpop.f32.mrf.mxu0
        %v1038 = vadd.f32 0.0, %v1037
        %v1039 = vpop.f32.mrf.mxu0
        %1040 = vdwg.mxu0
        %1041 = vmatpush.bf16.msra.mxu0 0
        %1042 = vmatpush.bf16.msra.mxu0 0
        %1043 = vmatpush.bf16.msra.mxu0 0
        %1044 = vmatpush.bf16.msra.mxu0 0
        %1045 = vmatpush.bf16.msra.mxu0 0
        %1046 = vmatpush.bf16.msra.mxu0 0
        %1047 = vmatpush.bf16.msra.mxu0 0
        %1048 = vmatpush.bf16.msra.mxu0 %v988
        %1049 = vmatmul.bf16.gmra.mxu0 %v976
        %v1050 = vpop.f32.mrf.mxu0
        %v1051 = vadd.f32 0.0, %v1050
        %v1052 = vpop.f32.mrf.mxu0
        %1053 = vdwg.mxu0
        %1054 = vmatpush.bf16.msra.mxu0 0
        %1055 = vmatpush.bf16.msra.mxu0 0
        %1056 = vmatpush.bf16.msra.mxu0 0
        %1057 = vmatpush.bf16.msra.mxu0 0
        %1058 = vmatpush.bf16.msra.mxu0 0
        %1059 = vmatpush.bf16.msra.mxu0 0
        %1060 = vmatpush.bf16.msra.mxu0 0
        %1061 = vmatpush.bf16.msra.mxu0 %v991
        %1062 = vmatmul.bf16.gmra.mxu0 %v976
        %v1063 = vpop.f32.mrf.mxu0
        %v1064 = vadd.f32 0.0, %v1063
        %v1065 = vpop.f32.mrf.mxu0
        %1066 = vdwg.mxu0
        %1067 = vmatpush.bf16.msra.mxu0 0
        %1068 = vmatpush.bf16.msra.mxu0 0
        %1069 = vmatpush.bf16.msra.mxu0 0
        %1070 = vmatpush.bf16.msra.mxu0 0
        %1071 = vmatpush.bf16.msra.mxu0 0
        %1072 = vmatpush.bf16.msra.mxu0 0
        %1073 = vmatpush.bf16.msra.mxu0 0
        %1074 = vmatpush.bf16.msra.mxu0 %v994
        %1075 = vmatmul.bf16.gmra.mxu0 %v976
        %v1076 = vpop.f32.mrf.mxu0
        %v1077 = vadd.f32 0.0, %v1076
        %v1078 = vpop.f32.mrf.mxu0
        %1079 = vdwg.mxu0
        %1080 = vmatpush.bf16.msra.mxu0 0
        %1081 = vmatpush.bf16.msra.mxu0 0
        %1082 = vmatpush.bf16.msra.mxu0 0
        %1083 = vmatpush.bf16.msra.mxu0 0
        %1084 = vmatpush.bf16.msra.mxu0 0
        %1085 = vmatpush.bf16.msra.mxu0 0
        %1086 = vmatpush.bf16.msra.mxu0 0
        %1087 = vmatpush.bf16.msra.mxu0 %v997
        %1088 = vmatmul.bf16.gmra.mxu0 %v976
        %v1089 = vpop.f32.mrf.mxu0
        %v1090 = vadd.f32 0.0, %v1089
        %v1091 = vpop.f32.mrf.mxu0
        %1092 = vdwg.mxu0
        %1093 = vmatpush.bf16.msra.mxu0 0
        %1094 = vmatpush.bf16.msra.mxu0 0
        %1095 = vmatpush.bf16.msra.mxu0 0
        %1096 = vmatpush.bf16.msra.mxu0 0
        %1097 = vmatpush.bf16.msra.mxu0 0
        %1098 = vmatpush.bf16.msra.mxu0 0
        %1099 = vmatpush.bf16.msra.mxu0 0
        %1100 = vmatpush.bf16.msra.mxu0 %v1000
        %1101 = vmatmul.bf16.gmra.mxu0 %v976
        %v1102 = vpop.f32.mrf.mxu0
        %v1103 = vadd.f32 0.0, %v1102
        %v1104 = vpop.f32.mrf.mxu0
        %1105 = vdwg.mxu0
        %v1106 = vadd.f32 %v910, %v1012
        %v1107 = vadd.f32 %v911, %v1025
        %v1108 = vadd.f32 %v912, %v1038
        %v1109 = vadd.f32 %v913, %v1051
        %v1110 = vadd.f32 %v914, %v1064
        %v1111 = vadd.f32 %v915, %v1077
        %v1112 = vadd.f32 %v916, %v1090
        %v1113 = vadd.f32 %v917, %v1103
        %v1114 = vld [vmem:[%s195] sm:$0xff]
        %v1115 = vld [vmem:[%s195 + $0x8] sm:$0xff]
        %v1116 = vld [vmem:[%s195 + $0x10] sm:$0x3]
        %s1117 = scalar_lea.vmem %s1, 20
        %v1118 = vld [vmem:[%s1117] sm:$0xf]
        %1120 = vst [vmem:[#allocation1] ss:$4 sm:$0xff] %v1114
        %s1122 = scalar_lea.vmem [#allocation1], 32
        %1123 = vst [vmem:[%s1122] ss:$4 sm:$0xff] %v1115
        %v1124 = vld.sshfl [vmem:[#allocation1] sm:$0xff pattern:$0x73625140]
        %v1126 = vld.sshfl [vmem:[#allocation1 + $0x8] sm:$0xff pattern:$0x73625140]
        %v1128 = vld.sshfl [vmem:[#allocation1 + $0x10] sm:$0xff pattern:$0x73625140]
        %v1130 = vld.sshfl [vmem:[#allocation1 + $0x18] sm:$0xff pattern:$0x73625140]
        %v1132 = vld.sshfl [vmem:[#allocation1 + $0x20] sm:$0xff pattern:$0x73625140]
        %v1134 = vld.sshfl [vmem:[#allocation1 + $0x28] sm:$0xff pattern:$0x73625140]
        %v1136 = vld.sshfl [vmem:[#allocation1 + $0x30] sm:$0xff pattern:$0x73625140]
        %v1138 = vld.sshfl [vmem:[#allocation1 + $0x38] sm:$0xff pattern:$0x73625140]
        %1141 = vst [vmem:[#allocation1] ss:$4 sm:$0xff] %v1116
        %v1142 = vld.sshfl [vmem:[#allocation1] sm:$0xff pattern:$0x73625140]
        %1144 = vrot.lane.b32.xlu0 %v1124, 93
        %v1145 = vpop.permute.xlu0 %1144
        %1146 = vrot.lane.b32.xlu0 %v1126, 93
        %v1147 = vpop.permute.xlu0 %1146
        %1148 = vrot.lane.b32.xlu0 %v1128, 93
        %v1149 = vpop.permute.xlu0 %1148
        %1150 = vrot.lane.b32.xlu0 %v1130, 93
        %v1151 = vpop.permute.xlu0 %1150
        %1152 = vrot.lane.b32.xlu0 %v1132, 93
        %v1153 = vpop.permute.xlu0 %1152
        %1154 = vrot.lane.b32.xlu0 %v1134, 93
        %v1155 = vpop.permute.xlu0 %1154
        %1156 = vrot.lane.b32.xlu0 %v1136, 93
        %v1157 = vpop.permute.xlu0 %1156
        %1158 = vrot.lane.b32.xlu0 %v1138, 93
        %v1159 = vpop.permute.xlu0 %1158
        %1160 = vrot.lane.b32.xlu0 %v1142, 93
        %v1161 = vpop.permute.xlu0 %1160
        %vm1162 = vcmask 760832
        %v1163 = vsel %vm1162, %v1145, %v1147
        %v1164 = vsel %vm1162, %v1147, %v1149
        %v1165 = vsel %vm1162, %v1149, %v1151
        %v1166 = vsel %vm1162, %v1151, %v1153
        %v1167 = vsel %vm1162, %v1153, %v1155
        %v1168 = vsel %vm1162, %v1155, %v1157
        %v1169 = vsel %vm1162, %v1157, %v1159
        %v1170 = vsel %vm1162, %v1159, %v1161
        %v1172 = vsel %vm257, %v1118, 0
        %v1175 = vsel %vm261, %v1163, 0
        %v1178 = vsel %vm261, %v1164, 0
        %v1181 = vsel %vm261, %v1165, 0
        %v1184 = vsel %vm261, %v1166, 0
        %v1187 = vsel %vm261, %v1167, 0
        %v1190 = vsel %vm261, %v1168, 0
        %v1193 = vsel %vm261, %v1169, 0
        %v1196 = vsel %vm261, %v1170, 0
        %1198 = vmatpush.bf16.msra.mxu0 0
        %1199 = vmatpush.bf16.msra.mxu0 0
        %1200 = vmatpush.bf16.msra.mxu0 0
        %1201 = vmatpush.bf16.msra.mxu0 0
        %1202 = vmatpush.bf16.msra.mxu0 0
        %1203 = vmatpush.bf16.msra.mxu0 0
        %1204 = vmatpush.bf16.msra.mxu0 0
        %1205 = vmatpush.bf16.msra.mxu0 %v1175
        %1206 = vmatmul.bf16.gmra.mxu0 %v1172
        %v1207 = vpop.f32.mrf.mxu0
        %v1208 = vadd.f32 0.0, %v1207
        %v1209 = vpop.f32.mrf.mxu0
        %1210 = vdwg.mxu0
        %1211 = vmatpush.bf16.msra.mxu0 0
        %1212 = vmatpush.bf16.msra.mxu0 0
        %1213 = vmatpush.bf16.msra.mxu0 0
        %1214 = vmatpush.bf16.msra.mxu0 0
        %1215 = vmatpush.bf16.msra.mxu0 0
        %1216 = vmatpush.bf16.msra.mxu0 0
        %1217 = vmatpush.bf16.msra.mxu0 0
        %1218 = vmatpush.bf16.msra.mxu0 %v1178
        %1219 = vmatmul.bf16.gmra.mxu0 %v1172
        %v1220 = vpop.f32.mrf.mxu0
        %v1221 = vadd.f32 0.0, %v1220
        %v1222 = vpop.f32.mrf.mxu0
        %1223 = vdwg.mxu0
        %1224 = vmatpush.bf16.msra.mxu0 0
        %1225 = vmatpush.bf16.msra.mxu0 0
        %1226 = vmatpush.bf16.msra.mxu0 0
        %1227 = vmatpush.bf16.msra.mxu0 0
        %1228 = vmatpush.bf16.msra.mxu0 0
        %1229 = vmatpush.bf16.msra.mxu0 0
        %1230 = vmatpush.bf16.msra.mxu0 0
        %1231 = vmatpush.bf16.msra.mxu0 %v1181
        %1232 = vmatmul.bf16.gmra.mxu0 %v1172
        %v1233 = vpop.f32.mrf.mxu0
        %v1234 = vadd.f32 0.0, %v1233
        %v1235 = vpop.f32.mrf.mxu0
        %1236 = vdwg.mxu0
        %1237 = vmatpush.bf16.msra.mxu0 0
        %1238 = vmatpush.bf16.msra.mxu0 0
        %1239 = vmatpush.bf16.msra.mxu0 0
        %1240 = vmatpush.bf16.msra.mxu0 0
        %1241 = vmatpush.bf16.msra.mxu0 0
        %1242 = vmatpush.bf16.msra.mxu0 0
        %1243 = vmatpush.bf16.msra.mxu0 0
        %1244 = vmatpush.bf16.msra.mxu0 %v1184
        %1245 = vmatmul.bf16.gmra.mxu0 %v1172
        %v1246 = vpop.f32.mrf.mxu0
        %v1247 = vadd.f32 0.0, %v1246
        %v1248 = vpop.f32.mrf.mxu0
        %1249 = vdwg.mxu0
        %1250 = vmatpush.bf16.msra.mxu0 0
        %1251 = vmatpush.bf16.msra.mxu0 0
        %1252 = vmatpush.bf16.msra.mxu0 0
        %1253 = vmatpush.bf16.msra.mxu0 0
        %1254 = vmatpush.bf16.msra.mxu0 0
        %1255 = vmatpush.bf16.msra.mxu0 0
        %1256 = vmatpush.bf16.msra.mxu0 0
        %1257 = vmatpush.bf16.msra.mxu0 %v1187
        %1258 = vmatmul.bf16.gmra.mxu0 %v1172
        %v1259 = vpop.f32.mrf.mxu0
        %v1260 = vadd.f32 0.0, %v1259
        %v1261 = vpop.f32.mrf.mxu0
        %1262 = vdwg.mxu0
        %1263 = vmatpush.bf16.msra.mxu0 0
        %1264 = vmatpush.bf16.msra.mxu0 0
        %1265 = vmatpush.bf16.msra.mxu0 0
        %1266 = vmatpush.bf16.msra.mxu0 0
        %1267 = vmatpush.bf16.msra.mxu0 0
        %1268 = vmatpush.bf16.msra.mxu0 0
        %1269 = vmatpush.bf16.msra.mxu0 0
        %1270 = vmatpush.bf16.msra.mxu0 %v1190
        %1271 = vmatmul.bf16.gmra.mxu0 %v1172
        %v1272 = vpop.f32.mrf.mxu0
        %v1273 = vadd.f32 0.0, %v1272
        %v1274 = vpop.f32.mrf.mxu0
        %1275 = vdwg.mxu0
        %1276 = vmatpush.bf16.msra.mxu0 0
        %1277 = vmatpush.bf16.msra.mxu0 0
        %1278 = vmatpush.bf16.msra.mxu0 0
        %1279 = vmatpush.bf16.msra.mxu0 0
        %1280 = vmatpush.bf16.msra.mxu0 0
        %1281 = vmatpush.bf16.msra.mxu0 0
        %1282 = vmatpush.bf16.msra.mxu0 0
        %1283 = vmatpush.bf16.msra.mxu0 %v1193
        %1284 = vmatmul.bf16.gmra.mxu0 %v1172
        %v1285 = vpop.f32.mrf.mxu0
        %v1286 = vadd.f32 0.0, %v1285
        %v1287 = vpop.f32.mrf.mxu0
        %1288 = vdwg.mxu0
        %1289 = vmatpush.bf16.msra.mxu0 0
        %1290 = vmatpush.bf16.msra.mxu0 0
        %1291 = vmatpush.bf16.msra.mxu0 0
        %1292 = vmatpush.bf16.msra.mxu0 0
        %1293 = vmatpush.bf16.msra.mxu0 0
        %1294 = vmatpush.bf16.msra.mxu0 0
        %1295 = vmatpush.bf16.msra.mxu0 0
        %1296 = vmatpush.bf16.msra.mxu0 %v1196
        %1297 = vmatmul.bf16.gmra.mxu0 %v1172
        %v1298 = vpop.f32.mrf.mxu0
        %v1299 = vadd.f32 0.0, %v1298
        %v1300 = vpop.f32.mrf.mxu0
        %1301 = vdwg.mxu0
        %v1302 = vadd.f32 %v1106, %v1208
        %v1303 = vadd.f32 %v1107, %v1221
        %v1304 = vadd.f32 %v1108, %v1234
        %v1305 = vadd.f32 %v1109, %v1247
        %v1306 = vadd.f32 %v1110, %v1260
        %v1307 = vadd.f32 %v1111, %v1273
        %v1308 = vadd.f32 %v1112, %v1286
        %v1309 = vadd.f32 %v1113, %v1299
        %v1310 = vld [vmem:[%s195] sm:$0xff]
        %v1311 = vld [vmem:[%s195 + $0x8] sm:$0xff]
        %v1312 = vld [vmem:[%s195 + $0x10] sm:$0x3]
        %s1313 = scalar_lea.vmem %s1, 24
        %v1314 = vld [vmem:[%s1313] sm:$0xf]
        %1316 = vst [vmem:[#allocation1] ss:$4 sm:$0xff] %v1310
        %s1318 = scalar_lea.vmem [#allocation1], 32
        %1319 = vst [vmem:[%s1318] ss:$4 sm:$0xff] %v1311
        %v1320 = vld.sshfl [vmem:[#allocation1] sm:$0xff pattern:$0x73625140]
        %v1322 = vld.sshfl [vmem:[#allocation1 + $0x8] sm:$0xff pattern:$0x73625140]
        %v1324 = vld.sshfl [vmem:[#allocation1 + $0x10] sm:$0xff pattern:$0x73625140]
        %v1326 = vld.sshfl [vmem:[#allocation1 + $0x18] sm:$0xff pattern:$0x73625140]
        %v1328 = vld.sshfl [vmem:[#allocation1 + $0x20] sm:$0xff pattern:$0x73625140]
        %v1330 = vld.sshfl [vmem:[#allocation1 + $0x28] sm:$0xff pattern:$0x73625140]
        %v1332 = vld.sshfl [vmem:[#allocation1 + $0x30] sm:$0xff pattern:$0x73625140]
        %v1334 = vld.sshfl [vmem:[#allocation1 + $0x38] sm:$0xff pattern:$0x73625140]
        %1337 = vst [vmem:[#allocation1] ss:$4 sm:$0xff] %v1312
        %v1338 = vld.sshfl [vmem:[#allocation1] sm:$0xff pattern:$0x73625140]
        %1340 = vrot.lane.b32.xlu0 %v1320, 62
        %v1341 = vpop.permute.xlu0 %1340
        %1342 = vrot.lane.b32.xlu0 %v1322, 62
        %v1343 = vpop.permute.xlu0 %1342
        %1344 = vrot.lane.b32.xlu0 %v1324, 62
        %v1345 = vpop.permute.xlu0 %1344
        %1346 = vrot.lane.b32.xlu0 %v1326, 62
        %v1347 = vpop.permute.xlu0 %1346
        %1348 = vrot.lane.b32.xlu0 %v1328, 62
        %v1349 = vpop.permute.xlu0 %1348
        %1350 = vrot.lane.b32.xlu0 %v1330, 62
        %v1351 = vpop.permute.xlu0 %1350
        %1352 = vrot.lane.b32.xlu0 %v1332, 62
        %v1353 = vpop.permute.xlu0 %1352
        %1354 = vrot.lane.b32.xlu0 %v1334, 62
        %v1355 = vpop.permute.xlu0 %1354
        %1356 = vrot.lane.b32.xlu0 %v1338, 62
        %v1357 = vpop.permute.xlu0 %1356
        %vm1358 = vcmask 506880
        %v1359 = vsel %vm1358, %v1341, %v1343
        %v1360 = vsel %vm1358, %v1343, %v1345
        %v1361 = vsel %vm1358, %v1345, %v1347
        %v1362 = vsel %vm1358, %v1347, %v1349
        %v1363 = vsel %vm1358, %v1349, %v1351
        %v1364 = vsel %vm1358, %v1351, %v1353
        %v1365 = vsel %vm1358, %v1353, %v1355
        %v1366 = vsel %vm1358, %v1355, %v1357
        %v1368 = vsel %vm257, %v1314, 0
        %v1371 = vsel %vm261, %v1359, 0
        %v1374 = vsel %vm261, %v1360, 0
        %v1377 = vsel %vm261, %v1361, 0
        %v1380 = vsel %vm261, %v1362, 0
        %v1383 = vsel %vm261, %v1363, 0
        %v1386 = vsel %vm261, %v1364, 0
        %v1389 = vsel %vm261, %v1365, 0
        %v1392 = vsel %vm261, %v1366, 0
        %1394 = vmatpush.bf16.msra.mxu0 0
        %1395 = vmatpush.bf16.msra.mxu0 0
        %1396 = vmatpush.bf16.msra.mxu0 0
        %1397 = vmatpush.bf16.msra.mxu0 0
        %1398 = vmatpush.bf16.msra.mxu0 0
        %1399 = vmatpush.bf16.msra.mxu0 0
        %1400 = vmatpush.bf16.msra.mxu0 0
        %1401 = vmatpush.bf16.msra.mxu0 %v1371
        %1402 = vmatmul.bf16.gmra.mxu0 %v1368
        %v1403 = vpop.f32.mrf.mxu0
        %v1404 = vadd.f32 0.0, %v1403
        %v1405 = vpop.f32.mrf.mxu0
        %1406 = vdwg.mxu0
        %1407 = vmatpush.bf16.msra.mxu0 0
        %1408 = vmatpush.bf16.msra.mxu0 0
        %1409 = vmatpush.bf16.msra.mxu0 0
        %1410 = vmatpush.bf16.msra.mxu0 0
        %1411 = vmatpush.bf16.msra.mxu0 0
        %1412 = vmatpush.bf16.msra.mxu0 0
        %1413 = vmatpush.bf16.msra.mxu0 0
        %1414 = vmatpush.bf16.msra.mxu0 %v1374
        %1415 = vmatmul.bf16.gmra.mxu0 %v1368
        %v1416 = vpop.f32.mrf.mxu0
        %v1417 = vadd.f32 0.0, %v1416
        %v1418 = vpop.f32.mrf.mxu0
        %1419 = vdwg.mxu0
        %1420 = vmatpush.bf16.msra.mxu0 0
        %1421 = vmatpush.bf16.msra.mxu0 0
        %1422 = vmatpush.bf16.msra.mxu0 0
        %1423 = vmatpush.bf16.msra.mxu0 0
        %1424 = vmatpush.bf16.msra.mxu0 0
        %1425 = vmatpush.bf16.msra.mxu0 0
        %1426 = vmatpush.bf16.msra.mxu0 0
        %1427 = vmatpush.bf16.msra.mxu0 %v1377
        %1428 = vmatmul.bf16.gmra.mxu0 %v1368
        %v1429 = vpop.f32.mrf.mxu0
        %v1430 = vadd.f32 0.0, %v1429
        %v1431 = vpop.f32.mrf.mxu0
        %1432 = vdwg.mxu0
        %1433 = vmatpush.bf16.msra.mxu0 0
        %1434 = vmatpush.bf16.msra.mxu0 0
        %1435 = vmatpush.bf16.msra.mxu0 0
        %1436 = vmatpush.bf16.msra.mxu0 0
        %1437 = vmatpush.bf16.msra.mxu0 0
        %1438 = vmatpush.bf16.msra.mxu0 0
        %1439 = vmatpush.bf16.msra.mxu0 0
        %1440 = vmatpush.bf16.msra.mxu0 %v1380
        %1441 = vmatmul.bf16.gmra.mxu0 %v1368
        %v1442 = vpop.f32.mrf.mxu0
        %v1443 = vadd.f32 0.0, %v1442
        %v1444 = vpop.f32.mrf.mxu0
        %1445 = vdwg.mxu0
        %1446 = vmatpush.bf16.msra.mxu0 0
        %1447 = vmatpush.bf16.msra.mxu0 0
        %1448 = vmatpush.bf16.msra.mxu0 0
        %1449 = vmatpush.bf16.msra.mxu0 0
        %1450 = vmatpush.bf16.msra.mxu0 0
        %1451 = vmatpush.bf16.msra.mxu0 0
        %1452 = vmatpush.bf16.msra.mxu0 0
        %1453 = vmatpush.bf16.msra.mxu0 %v1383
        %1454 = vmatmul.bf16.gmra.mxu0 %v1368
        %v1455 = vpop.f32.mrf.mxu0
        %v1456 = vadd.f32 0.0, %v1455
        %v1457 = vpop.f32.mrf.mxu0
        %1458 = vdwg.mxu0
        %1459 = vmatpush.bf16.msra.mxu0 0
        %1460 = vmatpush.bf16.msra.mxu0 0
        %1461 = vmatpush.bf16.msra.mxu0 0
        %1462 = vmatpush.bf16.msra.mxu0 0
        %1463 = vmatpush.bf16.msra.mxu0 0
        %1464 = vmatpush.bf16.msra.mxu0 0
        %1465 = vmatpush.bf16.msra.mxu0 0
        %1466 = vmatpush.bf16.msra.mxu0 %v1386
        %1467 = vmatmul.bf16.gmra.mxu0 %v1368
        %v1468 = vpop.f32.mrf.mxu0
        %v1469 = vadd.f32 0.0, %v1468
        %v1470 = vpop.f32.mrf.mxu0
        %1471 = vdwg.mxu0
        %1472 = vmatpush.bf16.msra.mxu0 0
        %1473 = vmatpush.bf16.msra.mxu0 0
        %1474 = vmatpush.bf16.msra.mxu0 0
        %1475 = vmatpush.bf16.msra.mxu0 0
        %1476 = vmatpush.bf16.msra.mxu0 0
        %1477 = vmatpush.bf16.msra.mxu0 0
        %1478 = vmatpush.bf16.msra.mxu0 0
        %1479 = vmatpush.bf16.msra.mxu0 %v1389
        %1480 = vmatmul.bf16.gmra.mxu0 %v1368
        %v1481 = vpop.f32.mrf.mxu0
        %v1482 = vadd.f32 0.0, %v1481
        %v1483 = vpop.f32.mrf.mxu0
        %1484 = vdwg.mxu0
        %1485 = vmatpush.bf16.msra.mxu0 0
        %1486 = vmatpush.bf16.msra.mxu0 0
        %1487 = vmatpush.bf16.msra.mxu0 0
        %1488 = vmatpush.bf16.msra.mxu0 0
        %1489 = vmatpush.bf16.msra.mxu0 0
        %1490 = vmatpush.bf16.msra.mxu0 0
        %1491 = vmatpush.bf16.msra.mxu0 0
        %1492 = vmatpush.bf16.msra.mxu0 %v1392
        %1493 = vmatmul.bf16.gmra.mxu0 %v1368
        %v1494 = vpop.f32.mrf.mxu0
        %v1495 = vadd.f32 0.0, %v1494
        %v1496 = vpop.f32.mrf.mxu0
        %1497 = vdwg.mxu0
        %v1498 = vadd.f32 %v1302, %v1404
        %v1499 = vadd.f32 %v1303, %v1417
        %v1500 = vadd.f32 %v1304, %v1430
        %v1501 = vadd.f32 %v1305, %v1443
        %v1502 = vadd.f32 %v1306, %v1456
        %v1503 = vadd.f32 %v1307, %v1469
        %v1504 = vadd.f32 %v1308, %v1482
        %v1505 = vadd.f32 %v1309, %v1495
        %v1506 = vld [vmem:[%s195] sm:$0xff]
        %v1507 = vld [vmem:[%s195 + $0x8] sm:$0xff]
        %v1508 = vld [vmem:[%s195 + $0x10] sm:$0x3]
        %s1509 = scalar_lea.vmem %s1, 28
        %v1510 = vld [vmem:[%s1509] sm:$0xf]
        %1512 = vst [vmem:[#allocation1] ss:$4 sm:$0xff] %v1506
        %s1514 = scalar_lea.vmem [#allocation1], 32
        %1515 = vst [vmem:[%s1514] ss:$4 sm:$0xff] %v1507
        %v1516 = vld.sshfl [vmem:[#allocation1] sm:$0xff pattern:$0x73625140]
        %v1518 = vld.sshfl [vmem:[#allocation1 + $0x8] sm:$0xff pattern:$0x73625140]
        %v1520 = vld.sshfl [vmem:[#allocation1 + $0x10] sm:$0xff pattern:$0x73625140]
        %v1522 = vld.sshfl [vmem:[#allocation1 + $0x18] sm:$0xff pattern:$0x73625140]
        %v1524 = vld.sshfl [vmem:[#allocation1 + $0x20] sm:$0xff pattern:$0x73625140]
        %v1526 = vld.sshfl [vmem:[#allocation1 + $0x28] sm:$0xff pattern:$0x73625140]
        %v1528 = vld.sshfl [vmem:[#allocation1 + $0x30] sm:$0xff pattern:$0x73625140]
        %v1530 = vld.sshfl [vmem:[#allocation1 + $0x38] sm:$0xff pattern:$0x73625140]
        %1533 = vst [vmem:[#allocation1] ss:$4 sm:$0xff] %v1508
        %v1534 = vld.sshfl [vmem:[#allocation1] sm:$0xff pattern:$0x73625140]
        %1536 = vrot.lane.b32.xlu0 %v1516, 61
        %v1537 = vpop.permute.xlu0 %1536
        %1538 = vrot.lane.b32.xlu0 %v1518, 61
        %v1539 = vpop.permute.xlu0 %1538
        %1540 = vrot.lane.b32.xlu0 %v1520, 61
        %v1541 = vpop.permute.xlu0 %1540
        %1542 = vrot.lane.b32.xlu0 %v1522, 61
        %v1543 = vpop.permute.xlu0 %1542
        %1544 = vrot.lane.b32.xlu0 %v1524, 61
        %v1545 = vpop.permute.xlu0 %1544
        %1546 = vrot.lane.b32.xlu0 %v1526, 61
        %v1547 = vpop.permute.xlu0 %1546
        %1548 = vrot.lane.b32.xlu0 %v1528, 61
        %v1549 = vpop.permute.xlu0 %1548
        %1550 = vrot.lane.b32.xlu0 %v1530, 61
        %v1551 = vpop.permute.xlu0 %1550
        %1552 = vrot.lane.b32.xlu0 %v1534, 61
        %v1553 = vpop.permute.xlu0 %1552
        %vm1554 = vcmask 498688
        %v1555 = vsel %vm1554, %v1537, %v1539
        %v1556 = vsel %vm1554, %v1539, %v1541
        %v1557 = vsel %vm1554, %v1541, %v1543
        %v1558 = vsel %vm1554, %v1543, %v1545
        %v1559 = vsel %vm1554, %v1545, %v1547
        %v1560 = vsel %vm1554, %v1547, %v1549
        %v1561 = vsel %vm1554, %v1549, %v1551
        %v1562 = vsel %vm1554, %v1551, %v1553
        %v1564 = vsel %vm257, %v1510, 0
        %v1567 = vsel %vm261, %v1555, 0
        %v1570 = vsel %vm261, %v1556, 0
        %v1573 = vsel %vm261, %v1557, 0
        %v1576 = vsel %vm261, %v1558, 0
        %v1579 = vsel %vm261, %v1559, 0
        %v1582 = vsel %vm261, %v1560, 0
        %v1585 = vsel %vm261, %v1561, 0
        %v1588 = vsel %vm261, %v1562, 0
        %1590 = vmatpush.bf16.msra.mxu0 0
        %1591 = vmatpush.bf16.msra.mxu0 0
        %1592 = vmatpush.bf16.msra.mxu0 0
        %1593 = vmatpush.bf16.msra.mxu0 0
        %1594 = vmatpush.bf16.msra.mxu0 0
        %1595 = vmatpush.bf16.msra.mxu0 0
        %1596 = vmatpush.bf16.msra.mxu0 0
        %1597 = vmatpush.bf16.msra.mxu0 %v1567
        %1598 = vmatmul.bf16.gmra.mxu0 %v1564
        %v1599 = vpop.f32.mrf.mxu0
        %v1600 = vadd.f32 0.0, %v1599
        %v1601 = vpop.f32.mrf.mxu0
        %1602 = vdwg.mxu0
        %1603 = vmatpush.bf16.msra.mxu0 0
        %1604 = vmatpush.bf16.msra.mxu0 0
        %1605 = vmatpush.bf16.msra.mxu0 0
        %1606 = vmatpush.bf16.msra.mxu0 0
        %1607 = vmatpush.bf16.msra.mxu0 0
        %1608 = vmatpush.bf16.msra.mxu0 0
        %1609 = vmatpush.bf16.msra.mxu0 0
        %1610 = vmatpush.bf16.msra.mxu0 %v1570
        %1611 = vmatmul.bf16.gmra.mxu0 %v1564
        %v1612 = vpop.f32.mrf.mxu0
        %v1613 = vadd.f32 0.0, %v1612
        %v1614 = vpop.f32.mrf.mxu0
        %1615 = vdwg.mxu0
        %1616 = vmatpush.bf16.msra.mxu0 0
        %1617 = vmatpush.bf16.msra.mxu0 0
        %1618 = vmatpush.bf16.msra.mxu0 0
        %1619 = vmatpush.bf16.msra.mxu0 0
        %1620 = vmatpush.bf16.msra.mxu0 0
        %1621 = vmatpush.bf16.msra.mxu0 0
        %1622 = vmatpush.bf16.msra.mxu0 0
        %1623 = vmatpush.bf16.msra.mxu0 %v1573
        %1624 = vmatmul.bf16.gmra.mxu0 %v1564
        %v1625 = vpop.f32.mrf.mxu0
        %v1626 = vadd.f32 0.0, %v1625
        %v1627 = vpop.f32.mrf.mxu0
        %1628 = vdwg.mxu0
        %1629 = vmatpush.bf16.msra.mxu0 0
        %1630 = vmatpush.bf16.msra.mxu0 0
        %1631 = vmatpush.bf16.msra.mxu0 0
        %1632 = vmatpush.bf16.msra.mxu0 0
        %1633 = vmatpush.bf16.msra.mxu0 0
        %1634 = vmatpush.bf16.msra.mxu0 0
        %1635 = vmatpush.bf16.msra.mxu0 0
        %1636 = vmatpush.bf16.msra.mxu0 %v1576
        %1637 = vmatmul.bf16.gmra.mxu0 %v1564
        %v1638 = vpop.f32.mrf.mxu0
        %v1639 = vadd.f32 0.0, %v1638
        %v1640 = vpop.f32.mrf.mxu0
        %1641 = vdwg.mxu0
        %1642 = vmatpush.bf16.msra.mxu0 0
        %1643 = vmatpush.bf16.msra.mxu0 0
        %1644 = vmatpush.bf16.msra.mxu0 0
        %1645 = vmatpush.bf16.msra.mxu0 0
        %1646 = vmatpush.bf16.msra.mxu0 0
        %1647 = vmatpush.bf16.msra.mxu0 0
        %1648 = vmatpush.bf16.msra.mxu0 0
        %1649 = vmatpush.bf16.msra.mxu0 %v1579
        %1650 = vmatmul.bf16.gmra.mxu0 %v1564
        %v1651 = vpop.f32.mrf.mxu0
        %v1652 = vadd.f32 0.0, %v1651
        %v1653 = vpop.f32.mrf.mxu0
        %1654 = vdwg.mxu0
        %1655 = vmatpush.bf16.msra.mxu0 0
        %1656 = vmatpush.bf16.msra.mxu0 0
        %1657 = vmatpush.bf16.msra.mxu0 0
        %1658 = vmatpush.bf16.msra.mxu0 0
        %1659 = vmatpush.bf16.msra.mxu0 0
        %1660 = vmatpush.bf16.msra.mxu0 0
        %1661 = vmatpush.bf16.msra.mxu0 0
        %1662 = vmatpush.bf16.msra.mxu0 %v1582
        %1663 = vmatmul.bf16.gmra.mxu0 %v1564
        %v1664 = vpop.f32.mrf.mxu0
        %v1665 = vadd.f32 0.0, %v1664
        %v1666 = vpop.f32.mrf.mxu0
        %1667 = vdwg.mxu0
        %1668 = vmatpush.bf16.msra.mxu0 0
        %1669 = vmatpush.bf16.msra.mxu0 0
        %1670 = vmatpush.bf16.msra.mxu0 0
        %1671 = vmatpush.bf16.msra.mxu0 0
        %1672 = vmatpush.bf16.msra.mxu0 0
        %1673 = vmatpush.bf16.msra.mxu0 0
        %1674 = vmatpush.bf16.msra.mxu0 0
        %1675 = vmatpush.bf16.msra.mxu0 %v1585
        %1676 = vmatmul.bf16.gmra.mxu0 %v1564
        %v1677 = vpop.f32.mrf.mxu0
        %v1678 = vadd.f32 0.0, %v1677
        %v1679 = vpop.f32.mrf.mxu0
        %1680 = vdwg.mxu0
        %1681 = vmatpush.bf16.msra.mxu0 0
        %1682 = vmatpush.bf16.msra.mxu0 0
        %1683 = vmatpush.bf16.msra.mxu0 0
        %1684 = vmatpush.bf16.msra.mxu0 0
        %1685 = vmatpush.bf16.msra.mxu0 0
        %1686 = vmatpush.bf16.msra.mxu0 0
        %1687 = vmatpush.bf16.msra.mxu0 0
        %1688 = vmatpush.bf16.msra.mxu0 %v1588
        %1689 = vmatmul.bf16.gmra.mxu0 %v1564
        %v1690 = vpop.f32.mrf.mxu0
        %v1691 = vadd.f32 0.0, %v1690
        %v1692 = vpop.f32.mrf.mxu0
        %1693 = vdwg.mxu0
        %v1694 = vadd.f32 %v1498, %v1600
        %v1695 = vadd.f32 %v1499, %v1613
        %v1696 = vadd.f32 %v1500, %v1626
        %v1697 = vadd.f32 %v1501, %v1639
        %v1698 = vadd.f32 %v1502, %v1652
        %v1699 = vadd.f32 %v1503, %v1665
        %v1700 = vadd.f32 %v1504, %v1678
        %v1701 = vadd.f32 %v1505, %v1691
        %v1702 = vld [vmem:[%s195] sm:$0xff]
        %v1703 = vld [vmem:[%s195 + $0x8] sm:$0xff]
        %v1704 = vld [vmem:[%s195 + $0x10] sm:$0x3]
        %s1705 = scalar_lea.vmem %s1, 32
        %v1706 = vld [vmem:[%s1705] sm:$0xf]
        %1708 = vst [vmem:[#allocation1] ss:$4 sm:$0xff] %v1702
        %s1710 = scalar_lea.vmem [#allocation1], 32
        %1711 = vst [vmem:[%s1710] ss:$4 sm:$0xff] %v1703
        %v1712 = vld.sshfl [vmem:[#allocation1] sm:$0xff pattern:$0x73625140]
        %v1714 = vld.sshfl [vmem:[#allocation1 + $0x8] sm:$0xff pattern:$0x73625140]
        %v1716 = vld.sshfl [vmem:[#allocation1 + $0x10] sm:$0xff pattern:$0x73625140]
        %v1718 = vld.sshfl [vmem:[#allocation1 + $0x18] sm:$0xff pattern:$0x73625140]
        %v1720 = vld.sshfl [vmem:[#allocation1 + $0x20] sm:$0xff pattern:$0x73625140]
        %v1722 = vld.sshfl [vmem:[#allocation1 + $0x28] sm:$0xff pattern:$0x73625140]
        %v1724 = vld.sshfl [vmem:[#allocation1 + $0x30] sm:$0xff pattern:$0x73625140]
        %v1726 = vld.sshfl [vmem:[#allocation1 + $0x38] sm:$0xff pattern:$0x73625140]
        %1729 = vst [vmem:[#allocation1] ss:$4 sm:$0xff] %v1704
        %v1730 = vld.sshfl [vmem:[#allocation1] sm:$0xff pattern:$0x73625140]
        %1732 = vrot.lane.b32.xlu0 %v1712, 60
        %v1733 = vpop.permute.xlu0 %1732
        %1734 = vrot.lane.b32.xlu0 %v1714, 60
        %v1735 = vpop.permute.xlu0 %1734
        %1736 = vrot.lane.b32.xlu0 %v1716, 60
        %v1737 = vpop.permute.xlu0 %1736
        %1738 = vrot.lane.b32.xlu0 %v1718, 60
        %v1739 = vpop.permute.xlu0 %1738
        %1740 = vrot.lane.b32.xlu0 %v1720, 60
        %v1741 = vpop.permute.xlu0 %1740
        %1742 = vrot.lane.b32.xlu0 %v1722, 60
        %v1743 = vpop.permute.xlu0 %1742
        %1744 = vrot.lane.b32.xlu0 %v1724, 60
        %v1745 = vpop.permute.xlu0 %1744
        %1746 = vrot.lane.b32.xlu0 %v1726, 60
        %v1747 = vpop.permute.xlu0 %1746
        %1748 = vrot.lane.b32.xlu0 %v1730, 60
        %v1749 = vpop.permute.xlu0 %1748
        %vm1750 = vcmask 490496
        %v1751 = vsel %vm1750, %v1733, %v1735
        %v1752 = vsel %vm1750, %v1735, %v1737
        %v1753 = vsel %vm1750, %v1737, %v1739
        %v1754 = vsel %vm1750, %v1739, %v1741
        %v1755 = vsel %vm1750, %v1741, %v1743
        %v1756 = vsel %vm1750, %v1743, %v1745
        %v1757 = vsel %vm1750, %v1745, %v1747
        %v1758 = vsel %vm1750, %v1747, %v1749
        %v1760 = vsel %vm257, %v1706, 0
        %v1763 = vsel %vm261, %v1751, 0
        %v1766 = vsel %vm261, %v1752, 0
        %v1769 = vsel %vm261, %v1753, 0
        %v1772 = vsel %vm261, %v1754, 0
        %v1775 = vsel %vm261, %v1755, 0
        %v1778 = vsel %vm261, %v1756, 0
        %v1781 = vsel %vm261, %v1757, 0
        %v1784 = vsel %vm261, %v1758, 0
        %1786 = vmatpush.bf16.msra.mxu0 0
        %1787 = vmatpush.bf16.msra.mxu0 0
        %1788 = vmatpush.bf16.msra.mxu0 0
        %1789 = vmatpush.bf16.msra.mxu0 0
        %1790 = vmatpush.bf16.msra.mxu0 0
        %1791 = vmatpush.bf16.msra.mxu0 0
        %1792 = vmatpush.bf16.msra.mxu0 0
        %1793 = vmatpush.bf16.msra.mxu0 %v1763
        %1794 = vmatmul.bf16.gmra.mxu0 %v1760
        %v1795 = vpop.f32.mrf.mxu0
        %v1796 = vadd.f32 0.0, %v1795
        %v1797 = vpop.f32.mrf.mxu0
        %1798 = vdwg.mxu0
        %1799 = vmatpush.bf16.msra.mxu0 0
        %1800 = vmatpush.bf16.msra.mxu0 0
        %1801 = vmatpush.bf16.msra.mxu0 0
        %1802 = vmatpush.bf16.msra.mxu0 0
        %1803 = vmatpush.bf16.msra.mxu0 0
        %1804 = vmatpush.bf16.msra.mxu0 0
        %1805 = vmatpush.bf16.msra.mxu0 0
        %1806 = vmatpush.bf16.msra.mxu0 %v1766
        %1807 = vmatmul.bf16.gmra.mxu0 %v1760
        %v1808 = vpop.f32.mrf.mxu0
        %v1809 = vadd.f32 0.0, %v1808
        %v1810 = vpop.f32.mrf.mxu0
        %1811 = vdwg.mxu0
        %1812 = vmatpush.bf16.msra.mxu0 0
        %1813 = vmatpush.bf16.msra.mxu0 0
        %1814 = vmatpush.bf16.msra.mxu0 0
        %1815 = vmatpush.bf16.msra.mxu0 0
        %1816 = vmatpush.bf16.msra.mxu0 0
        %1817 = vmatpush.bf16.msra.mxu0 0
        %1818 = vmatpush.bf16.msra.mxu0 0
        %1819 = vmatpush.bf16.msra.mxu0 %v1769
        %1820 = vmatmul.bf16.gmra.mxu0 %v1760
        %v1821 = vpop.f32.mrf.mxu0
        %v1822 = vadd.f32 0.0, %v1821
        %v1823 = vpop.f32.mrf.mxu0
        %1824 = vdwg.mxu0
        %1825 = vmatpush.bf16.msra.mxu0 0
        %1826 = vmatpush.bf16.msra.mxu0 0
        %1827 = vmatpush.bf16.msra.mxu0 0
        %1828 = vmatpush.bf16.msra.mxu0 0
        %1829 = vmatpush.bf16.msra.mxu0 0
        %1830 = vmatpush.bf16.msra.mxu0 0
        %1831 = vmatpush.bf16.msra.mxu0 0
        %1832 = vmatpush.bf16.msra.mxu0 %v1772
        %1833 = vmatmul.bf16.gmra.mxu0 %v1760
        %v1834 = vpop.f32.mrf.mxu0
        %v1835 = vadd.f32 0.0, %v1834
        %v1836 = vpop.f32.mrf.mxu0
        %1837 = vdwg.mxu0
        %1838 = vmatpush.bf16.msra.mxu0 0
        %1839 = vmatpush.bf16.msra.mxu0 0
        %1840 = vmatpush.bf16.msra.mxu0 0
        %1841 = vmatpush.bf16.msra.mxu0 0
        %1842 = vmatpush.bf16.msra.mxu0 0
        %1843 = vmatpush.bf16.msra.mxu0 0
        %1844 = vmatpush.bf16.msra.mxu0 0
        %1845 = vmatpush.bf16.msra.mxu0 %v1775
        %1846 = vmatmul.bf16.gmra.mxu0 %v1760
        %v1847 = vpop.f32.mrf.mxu0
        %v1848 = vadd.f32 0.0, %v1847
        %v1849 = vpop.f32.mrf.mxu0
        %1850 = vdwg.mxu0
        %1851 = vmatpush.bf16.msra.mxu0 0
        %1852 = vmatpush.bf16.msra.mxu0 0
        %1853 = vmatpush.bf16.msra.mxu0 0
        %1854 = vmatpush.bf16.msra.mxu0 0
        %1855 = vmatpush.bf16.msra.mxu0 0
        %1856 = vmatpush.bf16.msra.mxu0 0
        %1857 = vmatpush.bf16.msra.mxu0 0
        %1858 = vmatpush.bf16.msra.mxu0 %v1778
        %1859 = vmatmul.bf16.gmra.mxu0 %v1760
        %v1860 = vpop.f32.mrf.mxu0
        %v1861 = vadd.f32 0.0, %v1860
        %v1862 = vpop.f32.mrf.mxu0
        %1863 = vdwg.mxu0
        %1864 = vmatpush.bf16.msra.mxu0 0
        %1865 = vmatpush.bf16.msra.mxu0 0
        %1866 = vmatpush.bf16.msra.mxu0 0
        %1867 = vmatpush.bf16.msra.mxu0 0
        %1868 = vmatpush.bf16.msra.mxu0 0
        %1869 = vmatpush.bf16.msra.mxu0 0
        %1870 = vmatpush.bf16.msra.mxu0 0
        %1871 = vmatpush.bf16.msra.mxu0 %v1781
        %1872 = vmatmul.bf16.gmra.mxu0 %v1760
        %v1873 = vpop.f32.mrf.mxu0
        %v1874 = vadd.f32 0.0, %v1873
        %v1875 = vpop.f32.mrf.mxu0
        %1876 = vdwg.mxu0
        %1877 = vmatpush.bf16.msra.mxu0 0
        %1878 = vmatpush.bf16.msra.mxu0 0
        %1879 = vmatpush.bf16.msra.mxu0 0
        %1880 = vmatpush.bf16.msra.mxu0 0
        %1881 = vmatpush.bf16.msra.mxu0 0
        %1882 = vmatpush.bf16.msra.mxu0 0
        %1883 = vmatpush.bf16.msra.mxu0 0
        %1884 = vmatpush.bf16.msra.mxu0 %v1784
        %1885 = vmatmul.bf16.gmra.mxu0 %v1760
        %v1886 = vpop.f32.mrf.mxu0
        %v1887 = vadd.f32 0.0, %v1886
        %v1888 = vpop.f32.mrf.mxu0
        %1889 = vdwg.mxu0
        %v1890 = vadd.f32 %v1694, %v1796
        %v1891 = vadd.f32 %v1695, %v1809
        %v1892 = vadd.f32 %v1696, %v1822
        %v1893 = vadd.f32 %v1697, %v1835
        %v1894 = vadd.f32 %v1698, %v1848
        %v1895 = vadd.f32 %v1699, %v1861
        %v1896 = vadd.f32 %v1700, %v1874
        %v1897 = vadd.f32 %v1701, %v1887
        %v1898 = vld [vmem:[%s2] sm:$0xff]
        %1900 = vset.pattern.permute.xlu0 0
        %1901 = vperm.xlu0 %1900, %v1898
        %v1902 = vpop.permute.xlu0 %1901
        %v1904 = vadd.f32 %v1890, %v1902
        %v1905 = vadd.f32 %v1891, %v1902
        %v1906 = vadd.f32 %v1892, %v1902
        %v1907 = vadd.f32 %v1893, %v1902
        %v1908 = vadd.f32 %v1894, %v1902
        %v1909 = vadd.f32 %v1895, %v1902
        %v1910 = vadd.f32 %v1896, %v1902
        %v1911 = vadd.f32 %v1897, %v1902
        %v1912 = vld [vmem:[%s3] sm:$0xff]
        %v1914 = vperm.slane %v1912, 0
        %v1915 = vperm.slane %v1912, 1
        %v1916 = vperm.slane %v1912, 2
        %v1917 = vperm.slane %v1912, 3
        %v1918 = vperm.slane %v1912, 4
        %v1919 = vperm.slane %v1912, 5
        %v1920 = vperm.slane %v1912, 6
        %v1921 = vperm.slane %v1912, 7
        %v1930 = vmul.f32 %v1904, %v1914
        %v1931 = vmul.f32 %v1905, %v1915
        %v1932 = vmul.f32 %v1906, %v1916
        %v1933 = vmul.f32 %v1907, %v1917
        %v1934 = vmul.f32 %v1908, %v1918
        %v1935 = vmul.f32 %v1909, %v1919
        %v1936 = vmul.f32 %v1910, %v1920
        %v1937 = vmul.f32 %v1911, %v1921
        %v1938 = vadd.f32 %v1930, %v1931
        %v1939 = vadd.f32 %v1938, %v1932
        %v1940 = vadd.f32 %v1939, %v1933
        %v1941 = vadd.f32 %v1940, %v1934
        %v1942 = vadd.f32 %v1941, %v1935
        %v1943 = vadd.f32 %v1942, %v1936
        %v1944 = vadd.f32 %v1943, %v1937
        %1945 = vadd.xlane.f32.xlu0 %v1944
        %v1946 = vpop.xlane.xlu0 %1945
        %v1947 = vmul.f32 %v1946, 0.0010405828
        %v1948 = vsub.f32 %v1904, %v1947
        %v1949 = vsub.f32 %v1905, %v1947
        %v1950 = vsub.f32 %v1906, %v1947
        %v1951 = vsub.f32 %v1907, %v1947
        %v1952 = vsub.f32 %v1908, %v1947
        %v1953 = vsub.f32 %v1909, %v1947
        %v1954 = vsub.f32 %v1910, %v1947
        %v1955 = vsub.f32 %v1911, %v1947
        %v1956 = vmul.f32 %v1948, %v1914
        %v1957 = vmul.f32 %v1949, %v1915
        %v1958 = vmul.f32 %v1950, %v1916
        %v1959 = vmul.f32 %v1951, %v1917
        %v1960 = vmul.f32 %v1952, %v1918
        %v1961 = vmul.f32 %v1953, %v1919
        %v1962 = vmul.f32 %v1954, %v1920
        %v1963 = vmul.f32 %v1955, %v1921
        %v1964 = vmul.f32 %v1956, %v1956
        %v1965 = vmul.f32 %v1957, %v1957
        %v1966 = vmul.f32 %v1958, %v1958
        %v1967 = vmul.f32 %v1959, %v1959
        %v1968 = vmul.f32 %v1960, %v1960
        %v1969 = vmul.f32 %v1961, %v1961
        %v1970 = vmul.f32 %v1962, %v1962
        %v1971 = vmul.f32 %v1963, %v1963
        %v1972 = vadd.f32 %v1964, %v1965
        %v1973 = vadd.f32 %v1972, %v1966
        %v1974 = vadd.f32 %v1973, %v1967
        %v1975 = vadd.f32 %v1974, %v1968
        %v1976 = vadd.f32 %v1975, %v1969
        %v1977 = vadd.f32 %v1976, %v1970
        %v1978 = vadd.f32 %v1977, %v1971
        %1979 = vadd.xlane.f32.xlu0 %v1978
        %v1980 = vpop.xlane.xlu0 %1979
        %v1981 = vmul.f32 %v1980, 0.0010405828
        %v1982 = vadd.f32 %v1981, 1e-05
        %v1983 = vrsqrt.pop %v1982
        %v1984 = vmul.f32 %v1983, %v1982
        %v1985 = vmul.f32 %v1984, %v1983
        %v1986 = vmul.f32 0.5, %v1985
        %v1987 = vsub.f32 1.5, %v1986
        %v1988 = vmul.f32 %v1983, %v1987
        %vm1989 = vweird.f32 %v1982
        %vm1990 = vweird.f32 %v1983
        %vm1991 = vmor %vm1989, %vm1990
        %v1992 = vsel %vm1991, %v1983, %v1988
        %v1993 = vmul.f32 %v1948, %v1992
        %v1994 = vmul.f32 %v1949, %v1992
        %v1995 = vmul.f32 %v1950, %v1992
        %v1996 = vmul.f32 %v1951, %v1992
        %v1997 = vmul.f32 %v1952, %v1992
        %v1998 = vmul.f32 %v1953, %v1992
        %v1999 = vmul.f32 %v1954, %v1992
        %v2000 = vmul.f32 %v1955, %v1992
        %vm2001 = vcmp.ge.f32.partialorder %v1993, 0.0
        %vm2002 = vcmp.ge.f32.partialorder %v1994, 0.0
        %vm2003 = vcmp.ge.f32.partialorder %v1995, 0.0
        %vm2004 = vcmp.ge.f32.partialorder %v1996, 0.0
        %vm2005 = vcmp.ge.f32.partialorder %v1997, 0.0
        %vm2006 = vcmp.ge.f32.partialorder %v1998, 0.0
        %vm2007 = vcmp.ge.f32.partialorder %v1999, 0.0
        %vm2008 = vcmp.ge.f32.partialorder %v2000, 0.0
        %v2009 = vmul.f32 %v1993, 0.2
        %v2010 = vmul.f32 %v1994, 0.2
        %v2011 = vmul.f32 %v1995, 0.2
        %v2012 = vmul.f32 %v1996, 0.2
        %v2013 = vmul.f32 %v1997, 0.2
        %v2014 = vmul.f32 %v1998, 0.2
        %v2015 = vmul.f32 %v1999, 0.2
        %v2016 = vmul.f32 %v2000, 0.2
        %v2017 = vsel %vm2001, %v1993, %v2009
        %v2018 = vsel %vm2002, %v1994, %v2010
        %v2019 = vsel %vm2003, %v1995, %v2011
        %v2020 = vsel %vm2004, %v1996, %v2012
        %v2021 = vsel %vm2005, %v1997, %v2013
        %v2022 = vsel %vm2006, %v1998, %v2014
        %v2023 = vsel %vm2007, %v1999, %v2015
        %v2024 = vsel %vm2008, %v2000, %v2016
        %2025 = vst [vmem:[%s190] sm:$0xff] %v2017
        %2026 = vst [vmem:[%s190 + $0x8] sm:$0xff] %v2018
        %2027 = vst [vmem:[%s190 + $0x10] sm:$0xff] %v2019
        %2028 = vst [vmem:[%s190 + $0x18] sm:$0xff] %v2020
        %2029 = vst [vmem:[%s190 + $0x20] sm:$0xff] %v2021
        %2030 = vst [vmem:[%s190 + $0x28] sm:$0xff] %v2022
        %2031 = vst [vmem:[%s190 + $0x30] sm:$0xff] %v2023
        %2032 = vst [vmem:[%s190 + $0x38] sm:$0xff] %v2024
        %s2033 = sand.u32 %s115, 1
        %s2034 = scalar_lea.sflag [#allocation3], %s2033
        %s2035 = sand.u32 %s115, 1
        %s2036 = smul.addr %s2035, 64
        %s2037 = scalar_lea.vmem [#allocation2], %s2036
        // Predicated region
        $region37: #{tpu_custom_call.1} parent=35 // pred_check
          %p2038 = pneg %p125
        $region38: #{tpu_custom_call.1} parent=35 // pred_check_branch
          %2040 = sbr.rel (%p2038) target = $region40
        $region39: #{tpu_custom_call.1} parent=35 // pred_region
          %2042 = vsyncadd %s2034, 0
          %s2043 = smul.addr %s18, 8
          %s2044 = smul.addr %s2043, 8
          %s2045 = scalar_lea.hbm %s4, %s2044
          %s2047 = sshll.u32 %s2037, 4
          %s2048 = int_to_ptr.vmem [resolvable:$true] %s2047
          %s2049 = sshll.u32 %s2045, 4
          %s2050 = int_to_ptr.hbm [resolvable:$true] %s2049
          %2052 = dma.vmem_to_hbm [thread:$0]  %s2048, 1024, %s2050, %s2034
        $region40: #{tpu_custom_call.1} parent=35 // pred_fallthru
          _
      $region36: #{tpu_custom_call.1} parent=5 // pred_fallthru
        _
      %p2053 = scmp.le.s32.totalorder 2, %s13
      // Predicated region
      $region41: #{tpu_custom_call.1} parent=5 // pred_check
        %p2054 = pneg %p2053
      $region42: #{tpu_custom_call.1} parent=5 // pred_check_branch
        %2056 = sbr.rel (%p2054) target = $region44
      $region43: #{tpu_custom_call.1} parent=5 // pred_region
        %s2057 = ssub.s32 %s13, 2
        // Predicated region
        $region45: #{tpu_custom_call.1} parent=43 // pred_check
          %p2058 = pneg %p131
        $region46: #{tpu_custom_call.1} parent=43 // pred_check_branch
          %2060 = sbr.rel (%p2058) target = $region48
        $region47: #{tpu_custom_call.1} parent=43 // pred_region
          %s2061 = sand.u32 %s116, 1
          %s2062 = scalar_lea.sflag [#allocation3], %s2061
          %s2063 = sand.u32 %s116, 1
          %s2064 = smul.addr %s2063, 64
          %s2065 = scalar_lea.vmem [#allocation2], %s2064
          %2067 = dma.done %s2062, 1024
        $region48: #{tpu_custom_call.1} parent=43 // pred_fallthru
          _
      $region44: #{tpu_custom_call.1} parent=5 // pred_fallthru
        _
    $region6: #{tpu_custom_call.1} parent=1 // loop_footer
      %s17 = sadd.s32 1, %s13
    $region7: #{tpu_custom_call.1} parent=1 // loop_footer_branch
      %12 = sbr.rel target = $region3
    $region8: #{tpu_custom_call.1} parent=1 // loop_exit
      _
    %2068 = vsyncpa [#allocation3], 1
    %s2069 = scalar_lea.sflag [#allocation3], 1
    %2070 = vsyncpa %s2069, 1

</llo_original>
